<compile_context>
chip_gen: v7x
topology: tpu7x:2x2x1
jax: 0.10.0
libtpu: 0.0.40
codegen_flags: <defaults>
</compile_context>

<pallas_src>
import functools
import math

import jax
import jax.numpy as jnp
from jax.experimental import pallas as pl
from jax.experimental.pallas import tpu as pltpu

BN_EPS = 1e-5


def _bn_relu(h, gamma, beta):
    """Training-mode BatchNorm (biased var, centered stats) + ReLU.

    h: (N, C) f32, stats over rows; gamma/beta: (1, C) f32.  Returns f32.
    """
    n = h.shape[0]
    mean = jnp.sum(h, axis=0, keepdims=True) * (1.0 / float(n))
    centered = h - mean
    var = jnp.sum(centered * centered, axis=0, keepdims=True) * (1.0 / float(n))
    scale = gamma * jax.lax.rsqrt(var + BN_EPS)
    return jnp.maximum(centered * scale + beta, 0.0)


def mhd_sound_encoder_kernel(
    x_ref,
    w1_ref, g1_ref, b1_ref,
    w2_ref, g2_ref, b2_ref,
    w3_ref, g3_ref, b3_ref,
    wfc_ref, bfc_ref,
    out_ref,
):
    B = x_ref.shape[0]
    cdt = w1_ref.dtype  # MXU operand dtype (bf16 in the perf config, f32 for the exact check)
    rows8 = B * 8       # rows of every (batch, 8-step) slab

    def mm(a, w):
        return jnp.dot(a, w, preferred_element_type=jnp.float32)

    def cast(t):
        return t.astype(cdt)

    # Edge masks for the per-batch time shifts.  Slabs are (B*8, 128) with rows
    # ordered (b, t); a *global* sublane roll only corrupts the per-batch edge
    # rows, which are exactly the rows we zero out (conv zero padding).
    row = jax.lax.broadcasted_iota(jnp.int32, (rows8, 128), 0)
    first_row = (row & 7) == 0
    last_row = (row & 7) == 7

    def shift_down(t):  # out[b, i] = t[b, i-1], zero at i == 0
        return jnp.where(first_row, 0.0, pltpu.roll(t, shift=1, axis=0))

    def shift_up(t):    # out[b, i] = t[b, i+1], zero at i == 7
        return jnp.where(last_row, 0.0, pltpu.roll(t, shift=rows8 - 1, axis=0))

    # ---- Conv1: kernel (1,128) over the 128-wide spectral axis == matmul ----
    h1 = mm(x_ref[...].reshape(B * 32, 128), w1_ref[...])
    h1 = _bn_relu(h1, g1_ref[...], b1_ref[...])                     # (B*32, 128) f32

    # Wrapper pre-grouped time by residue mod 4: r{g}[b, i] == time step 4i+g.
    h1 = h1.reshape(B, 4, 8, 128)
    r0 = h1[:, 0].reshape(rows8, 128)
    r1 = h1[:, 1].reshape(rows8, 128)
    r2 = h1[:, 2].reshape(rows8, 128)
    r3 = h1[:, 3].reshape(rows8, 128)
    r3m = shift_down(r3)                                            # time 4m-1 (zero at m=0)
    r0p = shift_up(r0)                                              # time 4m+4 (zero at m=7)

    # ---- Conv2: (4,1), stride 2, pad 1 -> ONE fused (B*16,512)x(512,128) ----
    # even outputs 2m   use times {4m-1, 4m, 4m+1, 4m+2}  -> taps [r3m, r0, r1, r2]
    # odd  outputs 2m+1 use times {4m+1, 4m+2, 4m+3, 4m+4} -> taps [r1, r2, r3, r0p]
    even_in = jnp.concatenate([cast(r3m), cast(r0), cast(r1), cast(r2)], axis=1)
    odd_in = jnp.concatenate([cast(r1), cast(r2), cast(r3), cast(r0p)], axis=1)
    conv2_in = jnp.concatenate([even_in, odd_in], axis=0)           # (B*16, 512)
    h2 = _bn_relu(mm(conv2_in, w2_ref[...]), g2_ref[...], b2_ref[...])  # (B*16, 128) f32
    h2e = h2[:rows8]                                                # conv2 outputs 2n
    h2o = h2[rows8:]                                                # conv2 outputs 2n+1
    h2om = shift_down(h2o)                                          # conv2 output 2n-1 (zero at n=0)
    h2ep = shift_up(h2e)                                            # conv2 output 2n+2 (zero at n=7)

    # ---- Conv3: (4,1), stride 2, pad 1 -> ONE fused (B*8,512)x(512,256) ----
    conv3_in = jnp.concatenate([cast(h2om), cast(h2e), cast(h2o), cast(h2ep)], axis=1)
    h3 = _bn_relu(mm(conv3_in, w3_ref[...]), g3_ref[...], b3_ref[...])  # (B*8, 256) f32

    # ---- Final Linear as an accumulated per-time-step matmul ----
    # fc weight was pre-permuted in the wrapper to (8, 256, l_pad) so that
    # wfc[n, c, :] multiplies channel c of conv3 time step n (matches PyTorch's
    # channel-major .view() flatten).  The accumulation replaces the
    # sublane->lane flatten of (B, 8, 256) -> (B, 2048).
    h3 = cast(h3).reshape(B, 8, 256)
    acc = bfc_ref[...] + mm(h3[:, 0, :], wfc_ref[0])
    for n in range(1, 8):
        acc = acc + mm(h3[:, n, :], wfc_ref[n])
    out_ref[...] = acc.astype(out_ref.dtype)


@functools.partial(jax.jit, static_argnames=("latent_dim", "weights_dtype"))
def mhd_sound_encoder(x, params, latent_dim, weights_dtype=jnp.bfloat16):
    B = x.shape[0]
    assert x.shape[1:] == (1, 32, 128), "MHD sound input is (B, 1, 32, 128)"
    l_pad = ((latent_dim + 127) // 128) * 128
    wdt = jnp.dtype(weights_dtype)

    # ---- wrapper-side layout plumbing (reshape/transpose/pad/cast only) ----
    # time axis regrouped by residue mod 4 -> strided convs become contiguous;
    # input cast to the compute dtype here (halves HBM->VMEM bytes for bf16).
    x_perm = (x[:, 0].reshape(B, 8, 4, 128)
              .transpose(0, 2, 1, 3).astype(wdt))                     # (B, 4, 8, 128)
    w1m = params["w1"].reshape(128, 128).T.astype(wdt)                # (kw_in, co)
    # Stacked conv taps: row index k*128 + ci matches the kernel's lane-concat.
    w2s = (jnp.transpose(params["w2"][:, :, :, 0], (2, 1, 0))
           .reshape(512, 128).astype(wdt))                            # (4*ci, co)
    w3s = (jnp.transpose(params["w3"][:, :, :, 0], (2, 1, 0))
           .reshape(512, 256).astype(wdt))                            # (4*ci, co)
    # fc weight: PyTorch flatten index c*8+n -> wfc3[n, c, l]; lane-pad l.
    wfc3 = (params["fc_w"].reshape(latent_dim, 256, 8)
            .transpose(2, 1, 0))                                      # (8, 256, latent)
    wfc3 = jnp.pad(wfc3, ((0, 0), (0, 0), (0, l_pad - latent_dim))).astype(wdt)
    bfc = (jnp.pad(params["fc_b"], (0, l_pad - latent_dim))
           .reshape(1, l_pad).astype(jnp.float32))

    def bn(name, c):
        return (params[name + "_g"].reshape(1, c).astype(jnp.float32),
                params[name + "_b"].reshape(1, c).astype(jnp.float32))

    g1, b1 = bn("bn1", 128)
    g2, b2 = bn("bn2", 128)
    g3, b3 = bn("bn3", 256)

    args = (x_perm, w1m, g1, b1, w2s, g2, b2, w3s, g3, b3, wfc3, bfc)
    vmem = pl.BlockSpec(memory_space=pltpu.MemorySpace.VMEM)

    flops = 2 * B * (32 * 128 * 128 + 16 * 512 * 128 + 8 * 512 * 256 + 2048 * l_pad)
    bytes_accessed = sum(a.size * a.dtype.itemsize for a in args) + B * l_pad * 4

    out = pl.pallas_call(
        mhd_sound_encoder_kernel,
        out_shape=jax.ShapeDtypeStruct((B, l_pad), jnp.float32),
        in_specs=[vmem] * len(args),
        out_specs=vmem,
        # 48 MiB: plenty for this footprint, > the 32 MiB scoped default for
        # larger single-call batches, and still safe on v7x (64 MiB VMEM/TC).
        compiler_params=pltpu.CompilerParams(vmem_limit_bytes=48 * 1024 * 1024),
        cost_estimate=pl.CostEstimate(flops=flops, transcendentals=512,
                                      bytes_accessed=bytes_accessed),
    )(*args)
    return out[:, :latent_dim]


def init_params(key, latent_dim):
    """Deterministic synthetic parameters in PyTorch layouts."""
    ks = jax.random.split(key, 11)

    def u(k, shape, fan_in):
        bound = 1.0 / math.sqrt(fan_in)
        return jax.random.uniform(k, shape, jnp.float32, -bound, bound)

    return {
        "w1": u(ks[0], (128, 1, 1, 128), 128),
        "w2": u(ks[1], (128, 128, 4, 1), 128 * 4),
        "w3": u(ks[2], (256, 128, 4, 1), 128 * 4),
        "fc_w": u(ks[3], (latent_dim, 2048), 2048),
        "fc_b": u(ks[4], (latent_dim,), 2048),
        "bn1_g": jax.random.uniform(ks[5], (128,), jnp.float32, 0.5, 1.5),
        "bn1_b": jax.random.uniform(ks[6], (128,), jnp.float32, -0.2, 0.2),
        "bn2_g": jax.random.uniform(ks[7], (128,), jnp.float32, 0.5, 1.5),
        "bn2_b": jax.random.uniform(ks[8], (128,), jnp.float32, -0.2, 0.2),
        "bn3_g": jax.random.uniform(ks[9], (256,), jnp.float32, 0.5, 1.5),
        "bn3_b": jax.random.uniform(ks[10], (256,), jnp.float32, -0.2, 0.2),
    }


def reference_forward(x, params):
    """Pure-JAX reference mirroring the PyTorch forward (training-mode BN)."""
    prec = jax.lax.Precision.HIGHEST

    def conv(h, w, stride, pad):
        return jax.lax.conv_general_dilated(
            h, w, window_strides=stride, padding=pad,
            dimension_numbers=("NCHW", "OIHW", "NCHW"), precision=prec)

    def bn_relu(h, g, b):
        mean = h.mean(axis=(0, 2, 3), keepdims=True)
        var = ((h - mean) ** 2).mean(axis=(0, 2, 3), keepdims=True)
        h = (h - mean) * jax.lax.rsqrt(var + BN_EPS)
        h = h * g.reshape(1, -1, 1, 1) + b.reshape(1, -1, 1, 1)
        return jnp.maximum(h, 0.0)

    h = conv(x, params["w1"], (1, 1), [(0, 0), (0, 0)])
    h = bn_relu(h, params["bn1_g"], params["bn1_b"])
    h = conv(h, params["w2"], (2, 1), [(1, 1), (0, 0)])
    h = bn_relu(h, params["bn2_g"], params["bn2_b"])
    h = conv(h, params["w3"], (2, 1), [(1, 1), (0, 0)])
    h = bn_relu(h, params["bn3_g"], params["bn3_b"])
    h = h.reshape(h.shape[0], -1)  # (B, 256*8) channel-major, like .view(B, -1)
    return jnp.dot(h, params["fc_w"].T, precision=prec) + params["fc_b"]


if __name__ == "__main__":
    key = jax.random.PRNGKey(0)
    k_param, k_x = jax.random.split(key)

    batch, latent_dim = 2, 64
    params = init_params(k_param, latent_dim)
    x = jax.random.normal(k_x, (batch, 1, 32, 128), jnp.float32)

    ref = reference_forward(x, params)

    # Exactness check: f32 weights / activations.
    out_f32 = jax.block_until_ready(
        mhd_sound_encoder(x, params, latent_dim=latent_dim, weights_dtype=jnp.float32))
    assert out_f32.shape == (batch, latent_dim)
    assert jnp.allclose(out_f32, ref, atol=1e-2, rtol=1e-2), "f32 kernel mismatch vs reference"

    # Performance config: bf16 MXU operands, f32 accumulation + BN statistics.
    out_bf16 = jax.block_until_ready(
        mhd_sound_encoder(x, params, latent_dim=latent_dim, weights_dtype=jnp.bfloat16))
    assert out_bf16.shape == (batch, latent_dim)
    assert jnp.allclose(out_bf16, ref, atol=5e-2, rtol=5e-2), "bf16 kernel mismatch vs reference"

    print("KERNEL_OK")
</pallas_src>

<mosaic_0001>
module attributes {stable_mosaic.version = 11 : i64} {
  func.func @mhd_sound_encoder_kernel(%arg0: memref<2x4x8x128xf32, #tpu.memory_space<vmem>>, %arg1: memref<128x128xf32, #tpu.memory_space<vmem>>, %arg2: memref<1x128xf32, #tpu.memory_space<vmem>>, %arg3: memref<1x128xf32, #tpu.memory_space<vmem>>, %arg4: memref<512x128xf32, #tpu.memory_space<vmem>>, %arg5: memref<1x128xf32, #tpu.memory_space<vmem>>, %arg6: memref<1x128xf32, #tpu.memory_space<vmem>>, %arg7: memref<512x256xf32, #tpu.memory_space<vmem>>, %arg8: memref<1x256xf32, #tpu.memory_space<vmem>>, %arg9: memref<1x256xf32, #tpu.memory_space<vmem>>, %arg10: memref<8x256x128xf32, #tpu.memory_space<vmem>>, %arg11: memref<1x128xf32, #tpu.memory_space<vmem>>, %arg12: memref<2x128xf32, #tpu.memory_space<vmem>>) attributes {dimension_semantics = [], scalar_prefetch = 0 : i64, scratch_operands = 0 : i64, tpu.core_type = #tpu.core_type<tc>} {
    %0 = tpu.iota {dimensions = array<i32: 0>} : vector<16x128xi32>
    %c7_i32 = arith.constant 7 : i32
    %1 = vector.broadcast %c7_i32 : i32 to vector<16x128xi32>
    %2 = arith.andi %0, %1 : vector<16x128xi32>
    %c0_i32 = arith.constant 0 : i32
    %3 = vector.broadcast %c0_i32 : i32 to vector<16x128xi32>
    %4 = arith.cmpi eq, %2, %3 : vector<16x128xi32>
    %c7_i32_0 = arith.constant 7 : i32
    %5 = vector.broadcast %c7_i32_0 : i32 to vector<16x128xi32>
    %6 = arith.andi %0, %5 : vector<16x128xi32>
    %c7_i32_1 = arith.constant 7 : i32
    %7 = vector.broadcast %c7_i32_1 : i32 to vector<16x128xi32>
    %8 = arith.cmpi eq, %6, %7 : vector<16x128xi32>
    %c0 = arith.constant 0 : index
    %c0_2 = arith.constant 0 : index
    %c0_3 = arith.constant 0 : index
    %c0_4 = arith.constant 0 : index
    %9 = vector.load %arg0[%c0, %c0_2, %c0_3, %c0_4] : memref<2x4x8x128xf32, #tpu.memory_space<vmem>>, vector<2x4x8x128xf32>
    %10 = vector.shape_cast %9 : vector<2x4x8x128xf32> to vector<64x128xf32>
    %c0_5 = arith.constant 0 : index
    %c0_6 = arith.constant 0 : index
    %11 = vector.load %arg1[%c0_5, %c0_6] : memref<128x128xf32, #tpu.memory_space<vmem>>, vector<128x128xf32>
    %cst = arith.constant dense<0.000000e+00> : vector<64x128xf32>
    %12 = tpu.matmul %10, %11, %cst {dimension_numbers = #tpu.dot_dimension_numbers<[1], [0], [0], [1], [0, 0, 1, 1], [], []>} : vector<64x128xf32>, vector<128x128xf32>, vector<64x128xf32> -> vector<64x128xf32>
    %c0_7 = arith.constant 0 : index
    %c0_8 = arith.constant 0 : index
    %13 = vector.load %arg2[%c0_7, %c0_8] : memref<1x128xf32, #tpu.memory_space<vmem>>, vector<1x128xf32>
    %c0_9 = arith.constant 0 : index
    %c0_10 = arith.constant 0 : index
    %14 = vector.load %arg3[%c0_9, %c0_10] : memref<1x128xf32, #tpu.memory_space<vmem>>, vector<1x128xf32>
    %cst_11 = arith.constant dense<0.000000e+00> : vector<128xf32>
    %15 = vector.multi_reduction <add>, %12, %cst_11 [0] : vector<64x128xf32> to vector<128xf32>
    %16 = vector.shape_cast %15 : vector<128xf32> to vector<1x128xf32>
    %cst_12 = arith.constant 1.562500e-02 : f32
    %17 = vector.broadcast %cst_12 : f32 to vector<1x128xf32>
    %18 = arith.mulf %16, %17 : vector<1x128xf32>
    %19 = vector.broadcast %18 : vector<1x128xf32> to vector<64x128xf32>
    %20 = arith.subf %12, %19 : vector<64x128xf32>
    %21 = arith.mulf %20, %20 : vector<64x128xf32>
    %cst_13 = arith.constant dense<0.000000e+00> : vector<128xf32>
    %22 = vector.multi_reduction <add>, %21, %cst_13 [0] : vector<64x128xf32> to vector<128xf32>
    %23 = vector.shape_cast %22 : vector<128xf32> to vector<1x128xf32>
    %cst_14 = arith.constant 1.562500e-02 : f32
    %24 = vector.broadcast %cst_14 : f32 to vector<1x128xf32>
    %25 = arith.mulf %23, %24 : vector<1x128xf32>
    %cst_15 = arith.constant 9.99999974E-6 : f32
    %26 = vector.broadcast %cst_15 : f32 to vector<1x128xf32>
    %27 = arith.addf %25, %26 : vector<1x128xf32>
    %28 = math.rsqrt %27 : vector<1x128xf32>
    %29 = arith.mulf %13, %28 : vector<1x128xf32>
    %30 = vector.broadcast %29 : vector<1x128xf32> to vector<64x128xf32>
    %31 = arith.mulf %20, %30 : vector<64x128xf32>
    %32 = vector.broadcast %14 : vector<1x128xf32> to vector<64x128xf32>
    %33 = arith.addf %31, %32 : vector<64x128xf32>
    %cst_16 = arith.constant 0.000000e+00 : f32
    %34 = vector.broadcast %cst_16 : f32 to vector<64x128xf32>
    %35 = arith.maximumf %33, %34 : vector<64x128xf32>
    %36 = vector.shape_cast %35 : vector<64x128xf32> to vector<2x4x8x128xf32>
    %37 = vector.extract_strided_slice %36 {offsets = [0, 0, 0, 0], sizes = [2, 1, 8, 128], strides = [1, 1, 1, 1]} : vector<2x4x8x128xf32> to vector<2x1x8x128xf32>
    %38 = vector.shape_cast %37 : vector<2x1x8x128xf32> to vector<2x8x128xf32>
    %39 = vector.shape_cast %38 : vector<2x8x128xf32> to vector<16x128xf32>
    %40 = vector.extract_strided_slice %36 {offsets = [0, 1, 0, 0], sizes = [2, 1, 8, 128], strides = [1, 1, 1, 1]} : vector<2x4x8x128xf32> to vector<2x1x8x128xf32>
    %41 = vector.shape_cast %40 : vector<2x1x8x128xf32> to vector<2x8x128xf32>
    %42 = vector.shape_cast %41 : vector<2x8x128xf32> to vector<16x128xf32>
    %43 = vector.extract_strided_slice %36 {offsets = [0, 2, 0, 0], sizes = [2, 1, 8, 128], strides = [1, 1, 1, 1]} : vector<2x4x8x128xf32> to vector<2x1x8x128xf32>
    %44 = vector.shape_cast %43 : vector<2x1x8x128xf32> to vector<2x8x128xf32>
    %45 = vector.shape_cast %44 : vector<2x8x128xf32> to vector<16x128xf32>
    %46 = vector.extract_strided_slice %36 {offsets = [0, 3, 0, 0], sizes = [2, 1, 8, 128], strides = [1, 1, 1, 1]} : vector<2x4x8x128xf32> to vector<2x1x8x128xf32>
    %47 = vector.shape_cast %46 : vector<2x1x8x128xf32> to vector<2x8x128xf32>
    %48 = vector.shape_cast %47 : vector<2x8x128xf32> to vector<16x128xf32>
    %c1_i32 = arith.constant 1 : i32
    %49 = tpu.dynamic_rotate %48 by %c1_i32 dim 0 : vector<16x128xf32>, i32 -> vector<16x128xf32>
    %cst_17 = arith.constant 0.000000e+00 : f32
    %50 = vector.broadcast %cst_17 : f32 to vector<16x128xf32>
    %51 = arith.select %4, %50, %49 : vector<16x128xi1>, vector<16x128xf32>
    %c15_i32 = arith.constant 15 : i32
    %52 = tpu.dynamic_rotate %39 by %c15_i32 dim 0 : vector<16x128xf32>, i32 -> vector<16x128xf32>
    %cst_18 = arith.constant 0.000000e+00 : f32
    %53 = vector.broadcast %cst_18 : f32 to vector<16x128xf32>
    %54 = arith.select %8, %53, %52 : vector<16x128xi1>, vector<16x128xf32>
    %55 = tpu.concatenate %51, %39, %42, %45 in 1 : vector<16x128xf32>, vector<16x128xf32>, vector<16x128xf32>, vector<16x128xf32> -> vector<16x512xf32>
    %56 = tpu.concatenate %42, %45, %48, %54 in 1 : vector<16x128xf32>, vector<16x128xf32>, vector<16x128xf32>, vector<16x128xf32> -> vector<16x512xf32>
    %57 = tpu.concatenate %55, %56 in 0 : vector<16x512xf32>, vector<16x512xf32> -> vector<32x512xf32>
    %c0_19 = arith.constant 0 : index
    %c0_20 = arith.constant 0 : index
    %58 = vector.load %arg4[%c0_19, %c0_20] : memref<512x128xf32, #tpu.memory_space<vmem>>, vector<512x128xf32>
    %cst_21 = arith.constant dense<0.000000e+00> : vector<32x128xf32>
    %59 = tpu.matmul %57, %58, %cst_21 {dimension_numbers = #tpu.dot_dimension_numbers<[1], [0], [0], [1], [0, 0, 1, 1], [], []>} : vector<32x512xf32>, vector<512x128xf32>, vector<32x128xf32> -> vector<32x128xf32>
    %c0_22 = arith.constant 0 : index
    %c0_23 = arith.constant 0 : index
    %60 = vector.load %arg5[%c0_22, %c0_23] : memref<1x128xf32, #tpu.memory_space<vmem>>, vector<1x128xf32>
    %c0_24 = arith.constant 0 : index
    %c0_25 = arith.constant 0 : index
    %61 = vector.load %arg6[%c0_24, %c0_25] : memref<1x128xf32, #tpu.memory_space<vmem>>, vector<1x128xf32>
    %cst_26 = arith.constant dense<0.000000e+00> : vector<128xf32>
    %62 = vector.multi_reduction <add>, %59, %cst_26 [0] : vector<32x128xf32> to vector<128xf32>
    %63 = vector.shape_cast %62 : vector<128xf32> to vector<1x128xf32>
    %cst_27 = arith.constant 3.125000e-02 : f32
    %64 = vector.broadcast %cst_27 : f32 to vector<1x128xf32>
    %65 = arith.mulf %63, %64 : vector<1x128xf32>
    %66 = vector.broadcast %65 : vector<1x128xf32> to vector<32x128xf32>
    %67 = arith.subf %59, %66 : vector<32x128xf32>
    %68 = arith.mulf %67, %67 : vector<32x128xf32>
    %cst_28 = arith.constant dense<0.000000e+00> : vector<128xf32>
    %69 = vector.multi_reduction <add>, %68, %cst_28 [0] : vector<32x128xf32> to vector<128xf32>
    %70 = vector.shape_cast %69 : vector<128xf32> to vector<1x128xf32>
    %cst_29 = arith.constant 3.125000e-02 : f32
    %71 = vector.broadcast %cst_29 : f32 to vector<1x128xf32>
    %72 = arith.mulf %70, %71 : vector<1x128xf32>
    %cst_30 = arith.constant 9.99999974E-6 : f32
    %73 = vector.broadcast %cst_30 : f32 to vector<1x128xf32>
    %74 = arith.addf %72, %73 : vector<1x128xf32>
    %75 = math.rsqrt %74 : vector<1x128xf32>
    %76 = arith.mulf %60, %75 : vector<1x128xf32>
    %77 = vector.broadcast %76 : vector<1x128xf32> to vector<32x128xf32>
    %78 = arith.mulf %67, %77 : vector<32x128xf32>
    %79 = vector.broadcast %61 : vector<1x128xf32> to vector<32x128xf32>
    %80 = arith.addf %78, %79 : vector<32x128xf32>
    %cst_31 = arith.constant 0.000000e+00 : f32
    %81 = vector.broadcast %cst_31 : f32 to vector<32x128xf32>
    %82 = arith.maximumf %80, %81 : vector<32x128xf32>
    %83 = vector.extract_strided_slice %82 {offsets = [0, 0], sizes = [16, 128], strides = [1, 1]} : vector<32x128xf32> to vector<16x128xf32>
    %84 = vector.extract_strided_slice %82 {offsets = [16, 0], sizes = [16, 128], strides = [1, 1]} : vector<32x128xf32> to vector<16x128xf32>
    %c1_i32_32 = arith.constant 1 : i32
    %85 = tpu.dynamic_rotate %84 by %c1_i32_32 dim 0 : vector<16x128xf32>, i32 -> vector<16x128xf32>
    %cst_33 = arith.constant 0.000000e+00 : f32
    %86 = vector.broadcast %cst_33 : f32 to vector<16x128xf32>
    %87 = arith.select %4, %86, %85 : vector<16x128xi1>, vector<16x128xf32>
    %c15_i32_34 = arith.constant 15 : i32
    %88 = tpu.dynamic_rotate %83 by %c15_i32_34 dim 0 : vector<16x128xf32>, i32 -> vector<16x128xf32>
    %cst_35 = arith.constant 0.000000e+00 : f32
    %89 = vector.broadcast %cst_35 : f32 to vector<16x128xf32>
    %90 = arith.select %8, %89, %88 : vector<16x128xi1>, vector<16x128xf32>
    %91 = tpu.concatenate %87, %83, %84, %90 in 1 : vector<16x128xf32>, vector<16x128xf32>, vector<16x128xf32>, vector<16x128xf32> -> vector<16x512xf32>
    %c0_36 = arith.constant 0 : index
    %c0_37 = arith.constant 0 : index
    %92 = vector.load %arg7[%c0_36, %c0_37] : memref<512x256xf32, #tpu.memory_space<vmem>>, vector<512x256xf32>
    %cst_38 = arith.constant dense<0.000000e+00> : vector<16x256xf32>
    %93 = tpu.matmul %91, %92, %cst_38 {dimension_numbers = #tpu.dot_dimension_numbers<[1], [0], [0], [1], [0, 0, 1, 1], [], []>} : vector<16x512xf32>, vector<512x256xf32>, vector<16x256xf32> -> vector<16x256xf32>
    %c0_39 = arith.constant 0 : index
    %c0_40 = arith.constant 0 : index
    %94 = vector.load %arg8[%c0_39, %c0_40] : memref<1x256xf32, #tpu.memory_space<vmem>>, vector<1x256xf32>
    %c0_41 = arith.constant 0 : index
    %c0_42 = arith.constant 0 : index
    %95 = vector.load %arg9[%c0_41, %c0_42] : memref<1x256xf32, #tpu.memory_space<vmem>>, vector<1x256xf32>
    %cst_43 = arith.constant dense<0.000000e+00> : vector<256xf32>
    %96 = vector.multi_reduction <add>, %93, %cst_43 [0] : vector<16x256xf32> to vector<256xf32>
    %97 = vector.shape_cast %96 : vector<256xf32> to vector<1x256xf32>
    %cst_44 = arith.constant 6.250000e-02 : f32
    %98 = vector.broadcast %cst_44 : f32 to vector<1x256xf32>
    %99 = arith.mulf %97, %98 : vector<1x256xf32>
    %100 = vector.broadcast %99 : vector<1x256xf32> to vector<16x256xf32>
    %101 = arith.subf %93, %100 : vector<16x256xf32>
    %102 = arith.mulf %101, %101 : vector<16x256xf32>
    %cst_45 = arith.constant dense<0.000000e+00> : vector<256xf32>
    %103 = vector.multi_reduction <add>, %102, %cst_45 [0] : vector<16x256xf32> to vector<256xf32>
    %104 = vector.shape_cast %103 : vector<256xf32> to vector<1x256xf32>
    %cst_46 = arith.constant 6.250000e-02 : f32
    %105 = vector.broadcast %cst_46 : f32 to vector<1x256xf32>
    %106 = arith.mulf %104, %105 : vector<1x256xf32>
    %cst_47 = arith.constant 9.99999974E-6 : f32
    %107 = vector.broadcast %cst_47 : f32 to vector<1x256xf32>
    %108 = arith.addf %106, %107 : vector<1x256xf32>
    %109 = math.rsqrt %108 : vector<1x256xf32>
    %110 = arith.mulf %94, %109 : vector<1x256xf32>
    %111 = vector.broadcast %110 : vector<1x256xf32> to vector<16x256xf32>
    %112 = arith.mulf %101, %111 : vector<16x256xf32>
    %113 = vector.broadcast %95 : vector<1x256xf32> to vector<16x256xf32>
    %114 = arith.addf %112, %113 : vector<16x256xf32>
    %cst_48 = arith.constant 0.000000e+00 : f32
    %115 = vector.broadcast %cst_48 : f32 to vector<16x256xf32>
    %116 = arith.maximumf %114, %115 : vector<16x256xf32>
    %117 = vector.shape_cast %116 : vector<16x256xf32> to vector<2x8x256xf32>
    %c0_49 = arith.constant 0 : index
    %c0_50 = arith.constant 0 : index
    %118 = vector.load %arg11[%c0_49, %c0_50] : memref<1x128xf32, #tpu.memory_space<vmem>>, vector<1x128xf32>
    %119 = vector.extract_strided_slice %117 {offsets = [0, 0, 0], sizes = [2, 1, 256], strides = [1, 1, 1]} : vector<2x8x256xf32> to vector<2x1x256xf32>
    %120 = vector.shape_cast %119 : vector<2x1x256xf32> to vector<2x256xf32>
    %c0_51 = arith.constant 0 : index
    %c0_52 = arith.constant 0 : index
    %c0_53 = arith.constant 0 : index
    %121 = vector.load %arg10[%c0_51, %c0_52, %c0_53] : memref<8x256x128xf32, #tpu.memory_space<vmem>>, vector<1x256x128xf32>
    %122 = vector.shape_cast %121 : vector<1x256x128xf32> to vector<256x128xf32>
    %cst_54 = arith.constant dense<0.000000e+00> : vector<2x128xf32>
    %123 = tpu.matmul %120, %122, %cst_54 {dimension_numbers = #tpu.dot_dimension_numbers<[1], [0], [0], [1], [0, 0, 1, 1], [], []>} : vector<2x256xf32>, vector<256x128xf32>, vector<2x128xf32> -> vector<2x128xf32>
    %124 = vector.broadcast %118 : vector<1x128xf32> to vector<2x128xf32>
    %125 = arith.addf %124, %123 : vector<2x128xf32>
    %126 = vector.extract_strided_slice %117 {offsets = [0, 1, 0], sizes = [2, 1, 256], strides = [1, 1, 1]} : vector<2x8x256xf32> to vector<2x1x256xf32>
    %127 = vector.shape_cast %126 : vector<2x1x256xf32> to vector<2x256xf32>
    %c1 = arith.constant 1 : index
    %c0_55 = arith.constant 0 : index
    %c0_56 = arith.constant 0 : index
    %128 = vector.load %arg10[%c1, %c0_55, %c0_56] : memref<8x256x128xf32, #tpu.memory_space<vmem>>, vector<1x256x128xf32>
    %129 = vector.shape_cast %128 : vector<1x256x128xf32> to vector<256x128xf32>
    %cst_57 = arith.constant dense<0.000000e+00> : vector<2x128xf32>
    %130 = tpu.matmul %127, %129, %cst_57 {dimension_numbers = #tpu.dot_dimension_numbers<[1], [0], [0], [1], [0, 0, 1, 1], [], []>} : vector<2x256xf32>, vector<256x128xf32>, vector<2x128xf32> -> vector<2x128xf32>
    %131 = arith.addf %125, %130 : vector<2x128xf32>
    %132 = vector.extract_strided_slice %117 {offsets = [0, 2, 0], sizes = [2, 1, 256], strides = [1, 1, 1]} : vector<2x8x256xf32> to vector<2x1x256xf32>
    %133 = vector.shape_cast %132 : vector<2x1x256xf32> to vector<2x256xf32>
    %c2 = arith.constant 2 : index
    %c0_58 = arith.constant 0 : index
    %c0_59 = arith.constant 0 : index
    %134 = vector.load %arg10[%c2, %c0_58, %c0_59] : memref<8x256x128xf32, #tpu.memory_space<vmem>>, vector<1x256x128xf32>
    %135 = vector.shape_cast %134 : vector<1x256x128xf32> to vector<256x128xf32>
    %cst_60 = arith.constant dense<0.000000e+00> : vector<2x128xf32>
    %136 = tpu.matmul %133, %135, %cst_60 {dimension_numbers = #tpu.dot_dimension_numbers<[1], [0], [0], [1], [0, 0, 1, 1], [], []>} : vector<2x256xf32>, vector<256x128xf32>, vector<2x128xf32> -> vector<2x128xf32>
    %137 = arith.addf %131, %136 : vector<2x128xf32>
    %138 = vector.extract_strided_slice %117 {offsets = [0, 3, 0], sizes = [2, 1, 256], strides = [1, 1, 1]} : vector<2x8x256xf32> to vector<2x1x256xf32>
    %139 = vector.shape_cast %138 : vector<2x1x256xf32> to vector<2x256xf32>
    %c3 = arith.constant 3 : index
    %c0_61 = arith.constant 0 : index
    %c0_62 = arith.constant 0 : index
    %140 = vector.load %arg10[%c3, %c0_61, %c0_62] : memref<8x256x128xf32, #tpu.memory_space<vmem>>, vector<1x256x128xf32>
    %141 = vector.shape_cast %140 : vector<1x256x128xf32> to vector<256x128xf32>
    %cst_63 = arith.constant dense<0.000000e+00> : vector<2x128xf32>
    %142 = tpu.matmul %139, %141, %cst_63 {dimension_numbers = #tpu.dot_dimension_numbers<[1], [0], [0], [1], [0, 0, 1, 1], [], []>} : vector<2x256xf32>, vector<256x128xf32>, vector<2x128xf32> -> vector<2x128xf32>
    %143 = arith.addf %137, %142 : vector<2x128xf32>
    %144 = vector.extract_strided_slice %117 {offsets = [0, 4, 0], sizes = [2, 1, 256], strides = [1, 1, 1]} : vector<2x8x256xf32> to vector<2x1x256xf32>
    %145 = vector.shape_cast %144 : vector<2x1x256xf32> to vector<2x256xf32>
    %c4 = arith.constant 4 : index
    %c0_64 = arith.constant 0 : index
    %c0_65 = arith.constant 0 : index
    %146 = vector.load %arg10[%c4, %c0_64, %c0_65] : memref<8x256x128xf32, #tpu.memory_space<vmem>>, vector<1x256x128xf32>
    %147 = vector.shape_cast %146 : vector<1x256x128xf32> to vector<256x128xf32>
    %cst_66 = arith.constant dense<0.000000e+00> : vector<2x128xf32>
    %148 = tpu.matmul %145, %147, %cst_66 {dimension_numbers = #tpu.dot_dimension_numbers<[1], [0], [0], [1], [0, 0, 1, 1], [], []>} : vector<2x256xf32>, vector<256x128xf32>, vector<2x128xf32> -> vector<2x128xf32>
    %149 = arith.addf %143, %148 : vector<2x128xf32>
    %150 = vector.extract_strided_slice %117 {offsets = [0, 5, 0], sizes = [2, 1, 256], strides = [1, 1, 1]} : vector<2x8x256xf32> to vector<2x1x256xf32>
    %151 = vector.shape_cast %150 : vector<2x1x256xf32> to vector<2x256xf32>
    %c5 = arith.constant 5 : index
    %c0_67 = arith.constant 0 : index
    %c0_68 = arith.constant 0 : index
    %152 = vector.load %arg10[%c5, %c0_67, %c0_68] : memref<8x256x128xf32, #tpu.memory_space<vmem>>, vector<1x256x128xf32>
    %153 = vector.shape_cast %152 : vector<1x256x128xf32> to vector<256x128xf32>
    %cst_69 = arith.constant dense<0.000000e+00> : vector<2x128xf32>
    %154 = tpu.matmul %151, %153, %cst_69 {dimension_numbers = #tpu.dot_dimension_numbers<[1], [0], [0], [1], [0, 0, 1, 1], [], []>} : vector<2x256xf32>, vector<256x128xf32>, vector<2x128xf32> -> vector<2x128xf32>
    %155 = arith.addf %149, %154 : vector<2x128xf32>
    %156 = vector.extract_strided_slice %117 {offsets = [0, 6, 0], sizes = [2, 1, 256], strides = [1, 1, 1]} : vector<2x8x256xf32> to vector<2x1x256xf32>
    %157 = vector.shape_cast %156 : vector<2x1x256xf32> to vector<2x256xf32>
    %c6 = arith.constant 6 : index
    %c0_70 = arith.constant 0 : index
    %c0_71 = arith.constant 0 : index
    %158 = vector.load %arg10[%c6, %c0_70, %c0_71] : memref<8x256x128xf32, #tpu.memory_space<vmem>>, vector<1x256x128xf32>
    %159 = vector.shape_cast %158 : vector<1x256x128xf32> to vector<256x128xf32>
    %cst_72 = arith.constant dense<0.000000e+00> : vector<2x128xf32>
    %160 = tpu.matmul %157, %159, %cst_72 {dimension_numbers = #tpu.dot_dimension_numbers<[1], [0], [0], [1], [0, 0, 1, 1], [], []>} : vector<2x256xf32>, vector<256x128xf32>, vector<2x128xf32> -> vector<2x128xf32>
    %161 = arith.addf %155, %160 : vector<2x128xf32>
    %162 = vector.extract_strided_slice %117 {offsets = [0, 7, 0], sizes = [2, 1, 256], strides = [1, 1, 1]} : vector<2x8x256xf32> to vector<2x1x256xf32>
    %163 = vector.shape_cast %162 : vector<2x1x256xf32> to vector<2x256xf32>
    %c7 = arith.constant 7 : index
    %c0_73 = arith.constant 0 : index
    %c0_74 = arith.constant 0 : index
    %164 = vector.load %arg10[%c7, %c0_73, %c0_74] : memref<8x256x128xf32, #tpu.memory_space<vmem>>, vector<1x256x128xf32>
    %165 = vector.shape_cast %164 : vector<1x256x128xf32> to vector<256x128xf32>
    %cst_75 = arith.constant dense<0.000000e+00> : vector<2x128xf32>
    %166 = tpu.matmul %163, %165, %cst_75 {dimension_numbers = #tpu.dot_dimension_numbers<[1], [0], [0], [1], [0, 0, 1, 1], [], []>} : vector<2x256xf32>, vector<256x128xf32>, vector<2x128xf32> -> vector<2x128xf32>
    %167 = arith.addf %161, %166 : vector<2x128xf32>
    %c0_76 = arith.constant 0 : index
    %c0_77 = arith.constant 0 : index
    %168 = vector.load %arg12[%c0_76, %c0_77] : memref<2x128xf32, #tpu.memory_space<vmem>>, vector<2x128xf32>
    tpu.vector_store %arg12[%c0_76, %c0_77], %167 {strides = array<i32>} : memref<2x128xf32, #tpu.memory_space<vmem>>, vector<2x128xf32>,
    return
  }
}

</mosaic_0001>

<llo_original>
// kernel: mhd_sound_encoder.1
$region0: #{mhd_sound_encoder.1}
  #allocation0 [shape = 'u32[]', space=smem, size = 0x4, offset = 0x4, fixed_abs, tag = 'smem constant byte address 0x4 - core index']
  #allocation1 [shape = 'u32[144,128]{1,0:T(1,128)}', space=vmem, size = 0x12000, scoped, tag = 'internal scratch']
  %s0 = inlined_call_operand.vmem [shape: f32[2,4,8,128], index: 0, kind: input, shape index: {}]
  %s1 = inlined_call_operand.vmem [shape: f32[128,128], index: 1, kind: input, shape index: {}]
  %s2 = inlined_call_operand.vmem [shape: f32[1,128], index: 2, kind: input, shape index: {}]
  %s3 = inlined_call_operand.vmem [shape: f32[1,128], index: 3, kind: input, shape index: {}]
  %s4 = inlined_call_operand.vmem [shape: f32[512,128], index: 4, kind: input, shape index: {}]
  %s5 = inlined_call_operand.vmem [shape: f32[1,128], index: 5, kind: input, shape index: {}]
  %s6 = inlined_call_operand.vmem [shape: f32[1,128], index: 6, kind: input, shape index: {}]
  %s7 = inlined_call_operand.vmem [shape: f32[512,256], index: 7, kind: input, shape index: {}]
  %s8 = inlined_call_operand.vmem [shape: f32[1,256], index: 8, kind: input, shape index: {}]
  %s9 = inlined_call_operand.vmem [shape: f32[1,256], index: 9, kind: input, shape index: {}]
  %s10 = inlined_call_operand.vmem [shape: f32[8,256,128], index: 10, kind: input, shape index: {}]
  %s11 = inlined_call_operand.vmem [shape: f32[1,128], index: 11, kind: input, shape index: {}]
  %s12 = inlined_call_operand.hbm [shape: f32[2,128], index: 12, kind: output, shape index: {}]
  %s13 = sld [smem:[#allocation0]]
  $region58: #{mhd_sound_encoder.1} parent=0
    _
  %s15 = ssub.s32 1, %s13
  %s16 = scalar_select 0, %s15, %s13
  $region1: #{mhd_sound_encoder.1} parent=0
    #allocation2 [shape = 'u8[1024]{0}', space=vmem, size = 0x400, scoped, tag = 'output window, operand 0, single buffered']
    #allocation3 [shape = 's32[1]{0}', space=sflag, size = 0x4, scoped, tag = 'scoped memory for mhd_sound_encoder.1']
    %17 = vsyncpa [#allocation3], 0
    // Predicated region
    $region2: #{mhd_sound_encoder.1} parent=1 // pred_check
      _
    $region3: #{mhd_sound_encoder.1} parent=1 // pred_check_branch
      %19 = sbr.rel (0) target = $region5
    $region4: #{mhd_sound_encoder.1} parent=1 // pred_region
      _
    $region5: #{mhd_sound_encoder.1} parent=1 // pred_fallthru
      _
    // Predicated region
    $region6: #{mhd_sound_encoder.1} parent=1 // pred_check
      _
    $region7: #{mhd_sound_encoder.1} parent=1 // pred_check_branch
      %21 = sbr.rel (0) target = $region9
    $region8: #{mhd_sound_encoder.1} parent=1 // pred_region
      _
    $region9: #{mhd_sound_encoder.1} parent=1 // pred_fallthru
      _
    // Predicated region
    $region10: #{mhd_sound_encoder.1} parent=1 // pred_check
      _
    $region11: #{mhd_sound_encoder.1} parent=1 // pred_check_branch
      %23 = sbr.rel (0) target = $region13
    $region12: #{mhd_sound_encoder.1} parent=1 // pred_region
      _
    $region13: #{mhd_sound_encoder.1} parent=1 // pred_fallthru
      _
    // Predicated region
    $region14: #{mhd_sound_encoder.1} parent=1 // pred_check
      _
    $region15: #{mhd_sound_encoder.1} parent=1 // pred_check_branch
      %25 = sbr.rel (0) target = $region17
    $region16: #{mhd_sound_encoder.1} parent=1 // pred_region
      _
    $region17: #{mhd_sound_encoder.1} parent=1 // pred_fallthru
      _
    // Predicated region
    $region18: #{mhd_sound_encoder.1} parent=1 // pred_check
      _
    $region19: #{mhd_sound_encoder.1} parent=1 // pred_check_branch
      %27 = sbr.rel (0) target = $region21
    $region20: #{mhd_sound_encoder.1} parent=1 // pred_region
      _
    $region21: #{mhd_sound_encoder.1} parent=1 // pred_fallthru
      _
    // Predicated region
    $region22: #{mhd_sound_encoder.1} parent=1 // pred_check
      _
    $region23: #{mhd_sound_encoder.1} parent=1 // pred_check_branch
      %29 = sbr.rel (0) target = $region25
    $region24: #{mhd_sound_encoder.1} parent=1 // pred_region
      _
    $region25: #{mhd_sound_encoder.1} parent=1 // pred_fallthru
      _
    // Predicated region
    $region26: #{mhd_sound_encoder.1} parent=1 // pred_check
      _
    $region27: #{mhd_sound_encoder.1} parent=1 // pred_check_branch
      %31 = sbr.rel (0) target = $region29
    $region28: #{mhd_sound_encoder.1} parent=1 // pred_region
      _
    $region29: #{mhd_sound_encoder.1} parent=1 // pred_fallthru
      _
    // Predicated region
    $region30: #{mhd_sound_encoder.1} parent=1 // pred_check
      _
    $region31: #{mhd_sound_encoder.1} parent=1 // pred_check_branch
      %33 = sbr.rel (0) target = $region33
    $region32: #{mhd_sound_encoder.1} parent=1 // pred_region
      _
    $region33: #{mhd_sound_encoder.1} parent=1 // pred_fallthru
      _
    // Predicated region
    $region34: #{mhd_sound_encoder.1} parent=1 // pred_check
      _
    $region35: #{mhd_sound_encoder.1} parent=1 // pred_check_branch
      %35 = sbr.rel (0) target = $region37
    $region36: #{mhd_sound_encoder.1} parent=1 // pred_region
      _
    $region37: #{mhd_sound_encoder.1} parent=1 // pred_fallthru
      _
    // Predicated region
    $region38: #{mhd_sound_encoder.1} parent=1 // pred_check
      _
    $region39: #{mhd_sound_encoder.1} parent=1 // pred_check_branch
      %37 = sbr.rel (0) target = $region41
    $region40: #{mhd_sound_encoder.1} parent=1 // pred_region
      _
    $region41: #{mhd_sound_encoder.1} parent=1 // pred_fallthru
      _
    // Predicated region
    $region42: #{mhd_sound_encoder.1} parent=1 // pred_check
      _
    $region43: #{mhd_sound_encoder.1} parent=1 // pred_check_branch
      %39 = sbr.rel (0) target = $region45
    $region44: #{mhd_sound_encoder.1} parent=1 // pred_region
      _
    $region45: #{mhd_sound_encoder.1} parent=1 // pred_fallthru
      _
    // Predicated region
    $region46: #{mhd_sound_encoder.1} parent=1 // pred_check
      _
    $region47: #{mhd_sound_encoder.1} parent=1 // pred_check_branch
      %41 = sbr.rel (0) target = $region49
    $region48: #{mhd_sound_encoder.1} parent=1 // pred_region
      _
    $region49: #{mhd_sound_encoder.1} parent=1 // pred_fallthru
      _
    %v42 = vlaneseq
    %v43 = vshrl.u32 %v42, 7
    %v44 = vadd.s32 %v43, 8
    %v45 = vand.u32 %v43, 7
    %v46 = vand.u32 %v44, 7
    %vm47 = vcmp.eq.s32.totalorder %v45, 0
    %vm48 = vcmp.eq.s32.totalorder %v46, 0
    %vm49 = vcmp.eq.s32.totalorder %v45, 7
    %vm50 = vcmp.eq.s32.totalorder %v46, 7
    %v51 = vld [vmem:[%s0] sm:$0xff]
    %v52 = vld [vmem:[%s0 + $0x8] sm:$0xff]
    %v53 = vld [vmem:[%s0 + $0x10] sm:$0xff]
    %v54 = vld [vmem:[%s0 + $0x18] sm:$0xff]
    %v55 = vld [vmem:[%s0 + $0x20] sm:$0xff]
    %v56 = vld [vmem:[%s0 + $0x28] sm:$0xff]
    %v57 = vld [vmem:[%s0 + $0x30] sm:$0xff]
    %v58 = vld [vmem:[%s0 + $0x38] sm:$0xff]
    %v59 = vld [vmem:[%s1] sm:$0xff]
    %v60 = vld [vmem:[%s1 + $0x8] sm:$0xff]
    %v61 = vld [vmem:[%s1 + $0x10] sm:$0xff]
    %v62 = vld [vmem:[%s1 + $0x18] sm:$0xff]
    %v63 = vld [vmem:[%s1 + $0x20] sm:$0xff]
    %v64 = vld [vmem:[%s1 + $0x28] sm:$0xff]
    %v65 = vld [vmem:[%s1 + $0x30] sm:$0xff]
    %v66 = vld [vmem:[%s1 + $0x38] sm:$0xff]
    %v67 = vld [vmem:[%s1 + $0x40] sm:$0xff]
    %v68 = vld [vmem:[%s1 + $0x48] sm:$0xff]
    %v69 = vld [vmem:[%s1 + $0x50] sm:$0xff]
    %v70 = vld [vmem:[%s1 + $0x58] sm:$0xff]
    %v71 = vld [vmem:[%s1 + $0x60] sm:$0xff]
    %v72 = vld [vmem:[%s1 + $0x68] sm:$0xff]
    %v73 = vld [vmem:[%s1 + $0x70] sm:$0xff]
    %v74 = vld [vmem:[%s1 + $0x78] sm:$0xff]
    %75 = vmatprep.subr.mxu0 0.0
    %76 = vmatpush1.msra.mxu0 %v59
    %77 = vmatprep.subr.mxu0 0.0
    %78 = vmatpush1.msra.mxu0 %v60
    %79 = vmatprep.subr.mxu0 0.0
    %80 = vmatpush1.msra.mxu0 %v61
    %81 = vmatprep.subr.mxu0 0.0
    %82 = vmatpush1.msra.mxu0 %v62
    %83 = vmatprep.subr.mxu0 0.0
    %84 = vmatpush1.msra.mxu0 %v63
    %85 = vmatprep.subr.mxu0 0.0
    %86 = vmatpush1.msra.mxu0 %v64
    %87 = vmatprep.subr.mxu0 0.0
    %88 = vmatpush1.msra.mxu0 %v65
    %89 = vmatprep.subr.mxu0 0.0
    %90 = vmatpush1.msra.mxu0 %v66
    %91 = vmatprep.subr.mxu0 0.0
    %92 = vmatpush1.msra.mxu0 %v67
    %93 = vmatprep.subr.mxu0 0.0
    %94 = vmatpush1.msra.mxu0 %v68
    %95 = vmatprep.subr.mxu0 0.0
    %96 = vmatpush1.msra.mxu0 %v69
    %97 = vmatprep.subr.mxu0 0.0
    %98 = vmatpush1.msra.mxu0 %v70
    %99 = vmatprep.subr.mxu0 0.0
    %100 = vmatpush1.msra.mxu0 %v71
    %101 = vmatprep.subr.mxu0 0.0
    %102 = vmatpush1.msra.mxu0 %v72
    %103 = vmatprep.subr.mxu0 0.0
    %104 = vmatpush1.msra.mxu0 %v73
    %105 = vmatprep.subr.mxu0 0.0
    %106 = vmatpush1.msra.mxu0 %v74
    %107 = vmatprep.subr.mxu0 0.0
    %108 = vmatpush1.msra.mxu0 0.0
    %109 = vmatprep.subr.mxu0 0.0
    %110 = vmatpush1.msra.mxu0 0.0
    %111 = vmatprep.subr.mxu0 0.0
    %112 = vmatpush1.msra.mxu0 0.0
    %113 = vmatprep.subr.mxu0 0.0
    %114 = vmatpush1.msra.mxu0 0.0
    %115 = vmatprep.subr.mxu0 0.0
    %116 = vmatpush1.msra.mxu0 0.0
    %117 = vmatprep.subr.mxu0 0.0
    %118 = vmatpush1.msra.mxu0 0.0
    %119 = vmatprep.subr.mxu0 0.0
    %120 = vmatpush1.msra.mxu0 0.0
    %121 = vmatprep.subr.mxu0 0.0
    %122 = vmatpush1.msra.mxu0 0.0
    %123 = vmatprep.subr.mxu0 0.0
    %124 = vmatpush1.msra.mxu0 0.0
    %125 = vmatprep.subr.mxu0 0.0
    %126 = vmatpush1.msra.mxu0 0.0
    %127 = vmatprep.subr.mxu0 0.0
    %128 = vmatpush1.msra.mxu0 0.0
    %129 = vmatprep.subr.mxu0 0.0
    %130 = vmatpush1.msra.mxu0 0.0
    %131 = vmatprep.subr.mxu0 0.0
    %132 = vmatpush1.msra.mxu0 0.0
    %133 = vmatprep.subr.mxu0 0.0
    %134 = vmatpush1.msra.mxu0 0.0
    %135 = vmatprep.subr.mxu0 0.0
    %136 = vmatpush1.msra.mxu0 0.0
    %137 = vmatprep.subr.mxu0 0.0
    %138 = vmatpush1.msra.mxu0 0.0
    %139 = vmatprep.mubr.f32.mxu0 0.0
    %140 = vmatmul.mubr.f32.gmra.mrb[0].mxu0 %v51
    %v141 = vpop.f32.mrb[0].mxu0
    %v142 = vadd.f32 0.0, %v141
    %v143 = vpop.f32.mrb[0].mxu0
    %144 = vmatprep.mubr.f32.mxu0 0.0
    %145 = vmatmul.mubr.f32.gmra.mrb[0].mxu0 %v52
    %v146 = vpop.f32.mrb[0].mxu0
    %v147 = vadd.f32 0.0, %v146
    %v148 = vpop.f32.mrb[0].mxu0
    %149 = vmatprep.mubr.f32.mxu0 0.0
    %150 = vmatmul.mubr.f32.gmra.mrb[0].mxu0 %v53
    %v151 = vpop.f32.mrb[0].mxu0
    %v152 = vadd.f32 0.0, %v151
    %v153 = vpop.f32.mrb[0].mxu0
    %154 = vmatprep.mubr.f32.mxu0 0.0
    %155 = vmatmul.mubr.f32.gmra.mrb[0].mxu0 %v54
    %v156 = vpop.f32.mrb[0].mxu0
    %v157 = vadd.f32 0.0, %v156
    %v158 = vpop.f32.mrb[0].mxu0
    %159 = vmatprep.mubr.f32.mxu0 0.0
    %160 = vmatmul.mubr.f32.gmra.mrb[0].mxu0 %v55
    %v161 = vpop.f32.mrb[0].mxu0
    %v162 = vadd.f32 0.0, %v161
    %v163 = vpop.f32.mrb[0].mxu0
    %164 = vmatprep.mubr.f32.mxu0 0.0
    %165 = vmatmul.mubr.f32.gmra.mrb[0].mxu0 %v56
    %v166 = vpop.f32.mrb[0].mxu0
    %v167 = vadd.f32 0.0, %v166
    %v168 = vpop.f32.mrb[0].mxu0
    %169 = vmatprep.mubr.f32.mxu0 0.0
    %170 = vmatmul.mubr.f32.gmra.mrb[0].mxu0 %v57
    %v171 = vpop.f32.mrb[0].mxu0
    %v172 = vadd.f32 0.0, %v171
    %v173 = vpop.f32.mrb[0].mxu0
    %174 = vmatprep.mubr.f32.mxu0 0.0
    %175 = vmatmul.mubr.f32.gmra.mrb[0].mxu0 %v58
    %v176 = vpop.f32.mrb[0].mxu0
    %v177 = vadd.f32 0.0, %v176
    %v178 = vpop.f32.mrb[0].mxu0
    %179 = vdwg.mxu0
    %v180 = vld [vmem:[%s2] sm:$0x1]
    %v181 = vld [vmem:[%s3] sm:$0x1]
    %v182 = vadd.f32 %v142, %v147
    %v183 = vadd.f32 %v182, %v152
    %v184 = vadd.f32 %v183, %v157
    %v185 = vadd.f32 %v184, %v162
    %v186 = vadd.f32 %v185, %v167
    %v187 = vadd.f32 %v186, %v172
    %v188 = vadd.f32 %v187, %v177
    %v189 = vrot.slane %v188, 4
    %v190 = vadd.f32 %v188, %v189
    %v191 = vrot.slane %v190, 2
    %v192 = vadd.f32 %v190, %v191
    %v193 = vrot.slane %v192, 1
    %v194 = vadd.f32 %v192, %v193
    %v195 = vmul.f32 %v194, 0.015625
    %v196 = vsub.f32 %v142, %v195
    %v197 = vsub.f32 %v147, %v195
    %v198 = vsub.f32 %v152, %v195
    %v199 = vsub.f32 %v157, %v195
    %v200 = vsub.f32 %v162, %v195
    %v201 = vsub.f32 %v167, %v195
    %v202 = vsub.f32 %v172, %v195
    %v203 = vsub.f32 %v177, %v195
    %v204 = vmul.f32 %v196, %v196
    %v205 = vmul.f32 %v197, %v197
    %v206 = vmul.f32 %v198, %v198
    %v207 = vmul.f32 %v199, %v199
    %v208 = vmul.f32 %v200, %v200
    %v209 = vmul.f32 %v201, %v201
    %v210 = vmul.f32 %v202, %v202
    %v211 = vmul.f32 %v203, %v203
    %v212 = vadd.f32 %v204, %v205
    %v213 = vadd.f32 %v212, %v206
    %v214 = vadd.f32 %v213, %v207
    %v215 = vadd.f32 %v214, %v208
    %v216 = vadd.f32 %v215, %v209
    %v217 = vadd.f32 %v216, %v210
    %v218 = vadd.f32 %v217, %v211
    %v219 = vrot.slane %v218, 4
    %v220 = vadd.f32 %v218, %v219
    %v221 = vrot.slane %v220, 2
    %v222 = vadd.f32 %v220, %v221
    %v223 = vrot.slane %v222, 1
    %v224 = vadd.f32 %v222, %v223
    %v225 = vmul.f32 %v224, 0.015625
    %v226 = vadd.f32 %v225, 1e-05
    %v227 = vrsqrt.pop %v226
    %v228 = vmul.f32 %v180, %v227
    %v230 = vlaneseq
    %v231 = vshrl.u32 %v230, 7
    %v232 = vsub.s32 0, %v231
    %v233 = vrot.slane %v228, %v232
    %v235 = vmul.f32 %v196, %v233
    %v236 = vmul.f32 %v197, %v233
    %v237 = vmul.f32 %v198, %v233
    %v238 = vmul.f32 %v199, %v233
    %v239 = vmul.f32 %v200, %v233
    %v240 = vmul.f32 %v201, %v233
    %v241 = vmul.f32 %v202, %v233
    %v242 = vmul.f32 %v203, %v233
    %v244 = vlaneseq
    %v245 = vshrl.u32 %v244, 7
    %v246 = vsub.s32 0, %v245
    %v247 = vrot.slane %v181, %v246
    %v249 = vadd.f32 %v235, %v247
    %v250 = vadd.f32 %v236, %v247
    %v251 = vadd.f32 %v237, %v247
    %v252 = vadd.f32 %v238, %v247
    %v253 = vadd.f32 %v239, %v247
    %v254 = vadd.f32 %v240, %v247
    %v255 = vadd.f32 %v241, %v247
    %v256 = vadd.f32 %v242, %v247
    %v257 = vmax.f32 %v249, 0.0
    %v258 = vmax.f32 %v250, 0.0
    %v259 = vmax.f32 %v251, 0.0
    %v260 = vmax.f32 %v252, 0.0
    %v261 = vmax.f32 %v253, 0.0
    %v262 = vmax.f32 %v254, 0.0
    %v263 = vmax.f32 %v255, 0.0
    %v264 = vmax.f32 %v256, 0.0
    %v265 = vrot.slane %v260, 7
    %v266 = vrot.slane %v264, 7
    %vm267 = vcmp.lt.s32.totalorder %v43, 1
    %v268 = vsel %vm267, %v265, %v266
    %v269 = vsel %vm267, %v266, %v265
    %v270 = vsel %vm47, 0.0, %v269
    %v271 = vsel %vm48, 0.0, %v268
    %v272 = vrot.slane %v257, 1
    %v273 = vrot.slane %v261, 1
    %vm274 = vcmp.lt.s32.totalorder %v43, 7
    %v275 = vsel %vm274, %v272, %v273
    %v276 = vsel %vm274, %v273, %v272
    %v277 = vsel %vm49, 0.0, %v275
    %v278 = vsel %vm50, 0.0, %v276
    %v279 = vld [vmem:[%s4] sm:$0xff]
    %v280 = vld [vmem:[%s4 + $0x8] sm:$0xff]
    %v281 = vld [vmem:[%s4 + $0x10] sm:$0xff]
    %v282 = vld [vmem:[%s4 + $0x18] sm:$0xff]
    %v283 = vld [vmem:[%s4 + $0x20] sm:$0xff]
    %v284 = vld [vmem:[%s4 + $0x28] sm:$0xff]
    %v285 = vld [vmem:[%s4 + $0x30] sm:$0xff]
    %v286 = vld [vmem:[%s4 + $0x38] sm:$0xff]
    %v287 = vld [vmem:[%s4 + $0x40] sm:$0xff]
    %v288 = vld [vmem:[%s4 + $0x48] sm:$0xff]
    %v289 = vld [vmem:[%s4 + $0x50] sm:$0xff]
    %v290 = vld [vmem:[%s4 + $0x58] sm:$0xff]
    %v291 = vld [vmem:[%s4 + $0x60] sm:$0xff]
    %v292 = vld [vmem:[%s4 + $0x68] sm:$0xff]
    %v293 = vld [vmem:[%s4 + $0x70] sm:$0xff]
    %v294 = vld [vmem:[%s4 + $0x78] sm:$0xff]
    %v295 = vld [vmem:[%s4 + $0x80] sm:$0xff]
    %v296 = vld [vmem:[%s4 + $0x88] sm:$0xff]
    %v297 = vld [vmem:[%s4 + $0x90] sm:$0xff]
    %v298 = vld [vmem:[%s4 + $0x98] sm:$0xff]
    %v299 = vld [vmem:[%s4 + $0xa0] sm:$0xff]
    %v300 = vld [vmem:[%s4 + $0xa8] sm:$0xff]
    %v301 = vld [vmem:[%s4 + $0xb0] sm:$0xff]
    %v302 = vld [vmem:[%s4 + $0xb8] sm:$0xff]
    %v303 = vld [vmem:[%s4 + $0xc0] sm:$0xff]
    %v304 = vld [vmem:[%s4 + $0xc8] sm:$0xff]
    %v305 = vld [vmem:[%s4 + $0xd0] sm:$0xff]
    %v306 = vld [vmem:[%s4 + $0xd8] sm:$0xff]
    %v307 = vld [vmem:[%s4 + $0xe0] sm:$0xff]
    %v308 = vld [vmem:[%s4 + $0xe8] sm:$0xff]
    %v309 = vld [vmem:[%s4 + $0xf0] sm:$0xff]
    %v310 = vld [vmem:[%s4 + $0xf8] sm:$0xff]
    %v311 = vld [vmem:[%s4 + $0x100] sm:$0xff]
    %v312 = vld [vmem:[%s4 + $0x108] sm:$0xff]
    %v313 = vld [vmem:[%s4 + $0x110] sm:$0xff]
    %v314 = vld [vmem:[%s4 + $0x118] sm:$0xff]
    %v315 = vld [vmem:[%s4 + $0x120] sm:$0xff]
    %v316 = vld [vmem:[%s4 + $0x128] sm:$0xff]
    %v317 = vld [vmem:[%s4 + $0x130] sm:$0xff]
    %v318 = vld [vmem:[%s4 + $0x138] sm:$0xff]
    %v319 = vld [vmem:[%s4 + $0x140] sm:$0xff]
    %v320 = vld [vmem:[%s4 + $0x148] sm:$0xff]
    %v321 = vld [vmem:[%s4 + $0x150] sm:$0xff]
    %v322 = vld [vmem:[%s4 + $0x158] sm:$0xff]
    %v323 = vld [vmem:[%s4 + $0x160] sm:$0xff]
    %v324 = vld [vmem:[%s4 + $0x168] sm:$0xff]
    %v325 = vld [vmem:[%s4 + $0x170] sm:$0xff]
    %v326 = vld [vmem:[%s4 + $0x178] sm:$0xff]
    %v327 = vld [vmem:[%s4 + $0x180] sm:$0xff]
    %v328 = vld [vmem:[%s4 + $0x188] sm:$0xff]
    %v329 = vld [vmem:[%s4 + $0x190] sm:$0xff]
    %v330 = vld [vmem:[%s4 + $0x198] sm:$0xff]
    %v331 = vld [vmem:[%s4 + $0x1a0] sm:$0xff]
    %v332 = vld [vmem:[%s4 + $0x1a8] sm:$0xff]
    %v333 = vld [vmem:[%s4 + $0x1b0] sm:$0xff]
    %v334 = vld [vmem:[%s4 + $0x1b8] sm:$0xff]
    %v335 = vld [vmem:[%s4 + $0x1c0] sm:$0xff]
    %v336 = vld [vmem:[%s4 + $0x1c8] sm:$0xff]
    %v337 = vld [vmem:[%s4 + $0x1d0] sm:$0xff]
    %v338 = vld [vmem:[%s4 + $0x1d8] sm:$0xff]
    %v339 = vld [vmem:[%s4 + $0x1e0] sm:$0xff]
    %v340 = vld [vmem:[%s4 + $0x1e8] sm:$0xff]
    %v341 = vld [vmem:[%s4 + $0x1f0] sm:$0xff]
    %v342 = vld [vmem:[%s4 + $0x1f8] sm:$0xff]
    %343 = vmatprep.subr.mxu0 0.0
    %344 = vmatpush1.msra.mxu0 %v279
    %345 = vmatprep.subr.mxu0 0.0
    %346 = vmatpush1.msra.mxu0 %v280
    %347 = vmatprep.subr.mxu0 0.0
    %348 = vmatpush1.msra.mxu0 %v281
    %349 = vmatprep.subr.mxu0 0.0
    %350 = vmatpush1.msra.mxu0 %v282
    %351 = vmatprep.subr.mxu0 0.0
    %352 = vmatpush1.msra.mxu0 %v283
    %353 = vmatprep.subr.mxu0 0.0
    %354 = vmatpush1.msra.mxu0 %v284
    %355 = vmatprep.subr.mxu0 0.0
    %356 = vmatpush1.msra.mxu0 %v285
    %357 = vmatprep.subr.mxu0 0.0
    %358 = vmatpush1.msra.mxu0 %v286
    %359 = vmatprep.subr.mxu0 0.0
    %360 = vmatpush1.msra.mxu0 %v287
    %361 = vmatprep.subr.mxu0 0.0
    %362 = vmatpush1.msra.mxu0 %v288
    %363 = vmatprep.subr.mxu0 0.0
    %364 = vmatpush1.msra.mxu0 %v289
    %365 = vmatprep.subr.mxu0 0.0
    %366 = vmatpush1.msra.mxu0 %v290
    %367 = vmatprep.subr.mxu0 0.0
    %368 = vmatpush1.msra.mxu0 %v291
    %369 = vmatprep.subr.mxu0 0.0
    %370 = vmatpush1.msra.mxu0 %v292
    %371 = vmatprep.subr.mxu0 0.0
    %372 = vmatpush1.msra.mxu0 %v293
    %373 = vmatprep.subr.mxu0 0.0
    %374 = vmatpush1.msra.mxu0 %v294
    %375 = vmatprep.subr.mxu0 0.0
    %376 = vmatpush1.msra.mxu0 %v295
    %377 = vmatprep.subr.mxu0 0.0
    %378 = vmatpush1.msra.mxu0 %v296
    %379 = vmatprep.subr.mxu0 0.0
    %380 = vmatpush1.msra.mxu0 %v297
    %381 = vmatprep.subr.mxu0 0.0
    %382 = vmatpush1.msra.mxu0 %v298
    %383 = vmatprep.subr.mxu0 0.0
    %384 = vmatpush1.msra.mxu0 %v299
    %385 = vmatprep.subr.mxu0 0.0
    %386 = vmatpush1.msra.mxu0 %v300
    %387 = vmatprep.subr.mxu0 0.0
    %388 = vmatpush1.msra.mxu0 %v301
    %389 = vmatprep.subr.mxu0 0.0
    %390 = vmatpush1.msra.mxu0 %v302
    %391 = vmatprep.subr.mxu0 0.0
    %392 = vmatpush1.msra.mxu0 %v303
    %393 = vmatprep.subr.mxu0 0.0
    %394 = vmatpush1.msra.mxu0 %v304
    %395 = vmatprep.subr.mxu0 0.0
    %396 = vmatpush1.msra.mxu0 %v305
    %397 = vmatprep.subr.mxu0 0.0
    %398 = vmatpush1.msra.mxu0 %v306
    %399 = vmatprep.subr.mxu0 0.0
    %400 = vmatpush1.msra.mxu0 %v307
    %401 = vmatprep.subr.mxu0 0.0
    %402 = vmatpush1.msra.mxu0 %v308
    %403 = vmatprep.subr.mxu0 0.0
    %404 = vmatpush1.msra.mxu0 %v309
    %405 = vmatprep.subr.mxu0 0.0
    %406 = vmatpush1.msra.mxu0 %v310
    %407 = vmatprep.mubr.f32.mxu0 %v257
    %408 = vmatmul.mubr.f32.gmra.mrb[0].mxu0 %v270
    %v409 = vpop.f32.mrb[0].mxu0
    %v410 = vadd.f32 0.0, %v409
    %v411 = vpop.f32.mrb[0].mxu0
    %412 = vmatprep.mubr.f32.mxu0 %v261
    %413 = vmatmul.mubr.f32.gmra.mrb[0].mxu0 %v271
    %v414 = vpop.f32.mrb[0].mxu0
    %v415 = vadd.f32 0.0, %v414
    %v416 = vpop.f32.mrb[0].mxu0
    %417 = vmatprep.mubr.f32.mxu0 %v259
    %418 = vmatmul.mubr.f32.gmra.mrb[0].mxu0 %v258
    %v419 = vpop.f32.mrb[0].mxu0
    %v420 = vadd.f32 0.0, %v419
    %v421 = vpop.f32.mrb[0].mxu0
    %422 = vmatprep.mubr.f32.mxu0 %v263
    %423 = vmatmul.mubr.f32.gmra.mrb[0].mxu0 %v262
    %v424 = vpop.f32.mrb[0].mxu0
    %v425 = vadd.f32 0.0, %v424
    %v426 = vpop.f32.mrb[0].mxu0
    %427 = vdwg.mxu0
    %428 = vmatprep.subr.mxu0 0.0
    %429 = vmatpush1.msra.mxu0 %v311
    %430 = vmatprep.subr.mxu0 0.0
    %431 = vmatpush1.msra.mxu0 %v312
    %432 = vmatprep.subr.mxu0 0.0
    %433 = vmatpush1.msra.mxu0 %v313
    %434 = vmatprep.subr.mxu0 0.0
    %435 = vmatpush1.msra.mxu0 %v314
    %436 = vmatprep.subr.mxu0 0.0
    %437 = vmatpush1.msra.mxu0 %v315
    %438 = vmatprep.subr.mxu0 0.0
    %439 = vmatpush1.msra.mxu0 %v316
    %440 = vmatprep.subr.mxu0 0.0
    %441 = vmatpush1.msra.mxu0 %v317
    %442 = vmatprep.subr.mxu0 0.0
    %443 = vmatpush1.msra.mxu0 %v318
    %444 = vmatprep.subr.mxu0 0.0
    %445 = vmatpush1.msra.mxu0 %v319
    %446 = vmatprep.subr.mxu0 0.0
    %447 = vmatpush1.msra.mxu0 %v320
    %448 = vmatprep.subr.mxu0 0.0
    %449 = vmatpush1.msra.mxu0 %v321
    %450 = vmatprep.subr.mxu0 0.0
    %451 = vmatpush1.msra.mxu0 %v322
    %452 = vmatprep.subr.mxu0 0.0
    %453 = vmatpush1.msra.mxu0 %v323
    %454 = vmatprep.subr.mxu0 0.0
    %455 = vmatpush1.msra.mxu0 %v324
    %456 = vmatprep.subr.mxu0 0.0
    %457 = vmatpush1.msra.mxu0 %v325
    %458 = vmatprep.subr.mxu0 0.0
    %459 = vmatpush1.msra.mxu0 %v326
    %460 = vmatprep.subr.mxu0 0.0
    %461 = vmatpush1.msra.mxu0 %v327
    %462 = vmatprep.subr.mxu0 0.0
    %463 = vmatpush1.msra.mxu0 %v328
    %464 = vmatprep.subr.mxu0 0.0
    %465 = vmatpush1.msra.mxu0 %v329
    %466 = vmatprep.subr.mxu0 0.0
    %467 = vmatpush1.msra.mxu0 %v330
    %468 = vmatprep.subr.mxu0 0.0
    %469 = vmatpush1.msra.mxu0 %v331
    %470 = vmatprep.subr.mxu0 0.0
    %471 = vmatpush1.msra.mxu0 %v332
    %472 = vmatprep.subr.mxu0 0.0
    %473 = vmatpush1.msra.mxu0 %v333
    %474 = vmatprep.subr.mxu0 0.0
    %475 = vmatpush1.msra.mxu0 %v334
    %476 = vmatprep.subr.mxu0 0.0
    %477 = vmatpush1.msra.mxu0 %v335
    %478 = vmatprep.subr.mxu0 0.0
    %479 = vmatpush1.msra.mxu0 %v336
    %480 = vmatprep.subr.mxu0 0.0
    %481 = vmatpush1.msra.mxu0 %v337
    %482 = vmatprep.subr.mxu0 0.0
    %483 = vmatpush1.msra.mxu0 %v338
    %484 = vmatprep.subr.mxu0 0.0
    %485 = vmatpush1.msra.mxu0 %v339
    %486 = vmatprep.subr.mxu0 0.0
    %487 = vmatpush1.msra.mxu0 %v340
    %488 = vmatprep.subr.mxu0 0.0
    %489 = vmatpush1.msra.mxu0 %v341
    %490 = vmatprep.subr.mxu0 0.0
    %491 = vmatpush1.msra.mxu0 %v342
    %492 = vmatprep.mubr.f32.mxu0 %v259
    %493 = vmatmul.mubr.f32.gmra.mrb[0].mxu0 %v258
    %v494 = vpop.f32.mrb[0].mxu0
    %v495 = vadd.f32 %v410, %v494
    %v496 = vpop.f32.mrb[0].mxu0
    %497 = vmatprep.mubr.f32.mxu0 %v263
    %498 = vmatmul.mubr.f32.gmra.mrb[0].mxu0 %v262
    %v499 = vpop.f32.mrb[0].mxu0
    %v500 = vadd.f32 %v415, %v499
    %v501 = vpop.f32.mrb[0].mxu0
    %502 = vmatprep.mubr.f32.mxu0 %v277
    %503 = vmatmul.mubr.f32.gmra.mrb[0].mxu0 %v260
    %v504 = vpop.f32.mrb[0].mxu0
    %v505 = vadd.f32 %v420, %v504
    %v506 = vpop.f32.mrb[0].mxu0
    %507 = vmatprep.mubr.f32.mxu0 %v278
    %508 = vmatmul.mubr.f32.gmra.mrb[0].mxu0 %v264
    %v509 = vpop.f32.mrb[0].mxu0
    %v510 = vadd.f32 %v425, %v509
    %v511 = vpop.f32.mrb[0].mxu0
    %512 = vdwg.mxu0
    %v513 = vld [vmem:[%s5] sm:$0x1]
    %v514 = vld [vmem:[%s6] sm:$0x1]
    %v515 = vadd.f32 %v495, %v500
    %v516 = vadd.f32 %v515, %v505
    %v517 = vadd.f32 %v516, %v510
    %v518 = vrot.slane %v517, 4
    %v519 = vadd.f32 %v517, %v518
    %v520 = vrot.slane %v519, 2
    %v521 = vadd.f32 %v519, %v520
    %v522 = vrot.slane %v521, 1
    %v523 = vadd.f32 %v521, %v522
    %v524 = vmul.f32 %v523, 0.03125
    %v525 = vsub.f32 %v495, %v524
    %v526 = vsub.f32 %v500, %v524
    %v527 = vsub.f32 %v505, %v524
    %v528 = vsub.f32 %v510, %v524
    %v529 = vmul.f32 %v525, %v525
    %v530 = vmul.f32 %v526, %v526
    %v531 = vmul.f32 %v527, %v527
    %v532 = vmul.f32 %v528, %v528
    %v533 = vadd.f32 %v529, %v530
    %v534 = vadd.f32 %v533, %v531
    %v535 = vadd.f32 %v534, %v532
    %v536 = vrot.slane %v535, 4
    %v537 = vadd.f32 %v535, %v536
    %v538 = vrot.slane %v537, 2
    %v539 = vadd.f32 %v537, %v538
    %v540 = vrot.slane %v539, 1
    %v541 = vadd.f32 %v539, %v540
    %v542 = vmul.f32 %v541, 0.03125
    %v543 = vadd.f32 %v542, 1e-05
    %v544 = vrsqrt.pop %v543
    %v545 = vmul.f32 %v513, %v544
    %v547 = vlaneseq
    %v548 = vshrl.u32 %v547, 7
    %v549 = vsub.s32 0, %v548
    %v550 = vrot.slane %v545, %v549
    %v552 = vmul.f32 %v525, %v550
    %v553 = vmul.f32 %v526, %v550
    %v554 = vmul.f32 %v527, %v550
    %v555 = vmul.f32 %v528, %v550
    %v557 = vlaneseq
    %v558 = vshrl.u32 %v557, 7
    %v559 = vsub.s32 0, %v558
    %v560 = vrot.slane %v514, %v559
    %v562 = vadd.f32 %v552, %v560
    %v563 = vadd.f32 %v553, %v560
    %v564 = vadd.f32 %v554, %v560
    %v565 = vadd.f32 %v555, %v560
    %v566 = vmax.f32 %v562, 0.0
    %v567 = vmax.f32 %v563, 0.0
    %v568 = vmax.f32 %v564, 0.0
    %v569 = vmax.f32 %v565, 0.0
    %v570 = vrot.slane %v568, 7
    %v571 = vrot.slane %v569, 7
    %v572 = vsel %vm267, %v570, %v571
    %v573 = vsel %vm267, %v571, %v570
    %v574 = vsel %vm47, 0.0, %v573
    %v575 = vsel %vm48, 0.0, %v572
    %v576 = vrot.slane %v566, 1
    %v577 = vrot.slane %v567, 1
    %v578 = vsel %vm274, %v576, %v577
    %v579 = vsel %vm274, %v577, %v576
    %v580 = vsel %vm49, 0.0, %v578
    %v581 = vsel %vm50, 0.0, %v579
    %v582 = vld [vmem:[%s7] sm:$0xff]
    %v583 = vld [vmem:[%s7 + $0x8] sm:$0xff]
    %v584 = vld [vmem:[%s7 + $0x10] sm:$0xff]
    %v585 = vld [vmem:[%s7 + $0x18] sm:$0xff]
    %v586 = vld [vmem:[%s7 + $0x20] sm:$0xff]
    %v587 = vld [vmem:[%s7 + $0x28] sm:$0xff]
    %v588 = vld [vmem:[%s7 + $0x30] sm:$0xff]
    %v589 = vld [vmem:[%s7 + $0x38] sm:$0xff]
    %v590 = vld [vmem:[%s7 + $0x40] sm:$0xff]
    %v591 = vld [vmem:[%s7 + $0x48] sm:$0xff]
    %v592 = vld [vmem:[%s7 + $0x50] sm:$0xff]
    %v593 = vld [vmem:[%s7 + $0x58] sm:$0xff]
    %v594 = vld [vmem:[%s7 + $0x60] sm:$0xff]
    %v595 = vld [vmem:[%s7 + $0x68] sm:$0xff]
    %v596 = vld [vmem:[%s7 + $0x70] sm:$0xff]
    %v597 = vld [vmem:[%s7 + $0x78] sm:$0xff]
    %v598 = vld [vmem:[%s7 + $0x80] sm:$0xff]
    %v599 = vld [vmem:[%s7 + $0x88] sm:$0xff]
    %v600 = vld [vmem:[%s7 + $0x90] sm:$0xff]
    %v601 = vld [vmem:[%s7 + $0x98] sm:$0xff]
    %v602 = vld [vmem:[%s7 + $0xa0] sm:$0xff]
    %v603 = vld [vmem:[%s7 + $0xa8] sm:$0xff]
    %v604 = vld [vmem:[%s7 + $0xb0] sm:$0xff]
    %v605 = vld [vmem:[%s7 + $0xb8] sm:$0xff]
    %v606 = vld [vmem:[%s7 + $0xc0] sm:$0xff]
    %v607 = vld [vmem:[%s7 + $0xc8] sm:$0xff]
    %v608 = vld [vmem:[%s7 + $0xd0] sm:$0xff]
    %v609 = vld [vmem:[%s7 + $0xd8] sm:$0xff]
    %v610 = vld [vmem:[%s7 + $0xe0] sm:$0xff]
    %v611 = vld [vmem:[%s7 + $0xe8] sm:$0xff]
    %v612 = vld [vmem:[%s7 + $0xf0] sm:$0xff]
    %v613 = vld [vmem:[%s7 + $0xf8] sm:$0xff]
    %v614 = vld [vmem:[%s7 + $0x100] sm:$0xff]
    %v615 = vld [vmem:[%s7 + $0x108] sm:$0xff]
    %v616 = vld [vmem:[%s7 + $0x110] sm:$0xff]
    %v617 = vld [vmem:[%s7 + $0x118] sm:$0xff]
    %v618 = vld [vmem:[%s7 + $0x120] sm:$0xff]
    %v619 = vld [vmem:[%s7 + $0x128] sm:$0xff]
    %v620 = vld [vmem:[%s7 + $0x130] sm:$0xff]
    %v621 = vld [vmem:[%s7 + $0x138] sm:$0xff]
    %v622 = vld [vmem:[%s7 + $0x140] sm:$0xff]
    %v623 = vld [vmem:[%s7 + $0x148] sm:$0xff]
    %v624 = vld [vmem:[%s7 + $0x150] sm:$0xff]
    %v625 = vld [vmem:[%s7 + $0x158] sm:$0xff]
    %v626 = vld [vmem:[%s7 + $0x160] sm:$0xff]
    %v627 = vld [vmem:[%s7 + $0x168] sm:$0xff]
    %v628 = vld [vmem:[%s7 + $0x170] sm:$0xff]
    %v629 = vld [vmem:[%s7 + $0x178] sm:$0xff]
    %v630 = vld [vmem:[%s7 + $0x180] sm:$0xff]
    %v631 = vld [vmem:[%s7 + $0x188] sm:$0xff]
    %v632 = vld [vmem:[%s7 + $0x190] sm:$0xff]
    %v633 = vld [vmem:[%s7 + $0x198] sm:$0xff]
    %v634 = vld [vmem:[%s7 + $0x1a0] sm:$0xff]
    %v635 = vld [vmem:[%s7 + $0x1a8] sm:$0xff]
    %v636 = vld [vmem:[%s7 + $0x1b0] sm:$0xff]
    %v637 = vld [vmem:[%s7 + $0x1b8] sm:$0xff]
    %v638 = vld [vmem:[%s7 + $0x1c0] sm:$0xff]
    %v639 = vld [vmem:[%s7 + $0x1c8] sm:$0xff]
    %v640 = vld [vmem:[%s7 + $0x1d0] sm:$0xff]
    %v641 = vld [vmem:[%s7 + $0x1d8] sm:$0xff]
    %v642 = vld [vmem:[%s7 + $0x1e0] sm:$0xff]
    %v643 = vld [vmem:[%s7 + $0x1e8] sm:$0xff]
    %v644 = vld [vmem:[%s7 + $0x1f0] sm:$0xff]
    %v645 = vld [vmem:[%s7 + $0x1f8] sm:$0xff]
    %v646 = vld [vmem:[%s7 + $0x200] sm:$0xff]
    %v647 = vld [vmem:[%s7 + $0x208] sm:$0xff]
    %v648 = vld [vmem:[%s7 + $0x210] sm:$0xff]
    %v649 = vld [vmem:[%s7 + $0x218] sm:$0xff]
    %v650 = vld [vmem:[%s7 + $0x220] sm:$0xff]
    %v651 = vld [vmem:[%s7 + $0x228] sm:$0xff]
    %v652 = vld [vmem:[%s7 + $0x230] sm:$0xff]
    %v653 = vld [vmem:[%s7 + $0x238] sm:$0xff]
    %v654 = vld [vmem:[%s7 + $0x240] sm:$0xff]
    %v655 = vld [vmem:[%s7 + $0x248] sm:$0xff]
    %v656 = vld [vmem:[%s7 + $0x250] sm:$0xff]
    %v657 = vld [vmem:[%s7 + $0x258] sm:$0xff]
    %v658 = vld [vmem:[%s7 + $0x260] sm:$0xff]
    %v659 = vld [vmem:[%s7 + $0x268] sm:$0xff]
    %v660 = vld [vmem:[%s7 + $0x270] sm:$0xff]
    %v661 = vld [vmem:[%s7 + $0x278] sm:$0xff]
    %v662 = vld [vmem:[%s7 + $0x280] sm:$0xff]
    %v663 = vld [vmem:[%s7 + $0x288] sm:$0xff]
    %v664 = vld [vmem:[%s7 + $0x290] sm:$0xff]
    %v665 = vld [vmem:[%s7 + $0x298] sm:$0xff]
    %v666 = vld [vmem:[%s7 + $0x2a0] sm:$0xff]
    %v667 = vld [vmem:[%s7 + $0x2a8] sm:$0xff]
    %v668 = vld [vmem:[%s7 + $0x2b0] sm:$0xff]
    %v669 = vld [vmem:[%s7 + $0x2b8] sm:$0xff]
    %v670 = vld [vmem:[%s7 + $0x2c0] sm:$0xff]
    %v671 = vld [vmem:[%s7 + $0x2c8] sm:$0xff]
    %v672 = vld [vmem:[%s7 + $0x2d0] sm:$0xff]
    %v673 = vld [vmem:[%s7 + $0x2d8] sm:$0xff]
    %v674 = vld [vmem:[%s7 + $0x2e0] sm:$0xff]
    %v675 = vld [vmem:[%s7 + $0x2e8] sm:$0xff]
    %v676 = vld [vmem:[%s7 + $0x2f0] sm:$0xff]
    %v677 = vld [vmem:[%s7 + $0x2f8] sm:$0xff]
    %v678 = vld [vmem:[%s7 + $0x300] sm:$0xff]
    %v679 = vld [vmem:[%s7 + $0x308] sm:$0xff]
    %v680 = vld [vmem:[%s7 + $0x310] sm:$0xff]
    %v681 = vld [vmem:[%s7 + $0x318] sm:$0xff]
    %v682 = vld [vmem:[%s7 + $0x320] sm:$0xff]
    %v683 = vld [vmem:[%s7 + $0x328] sm:$0xff]
    %v684 = vld [vmem:[%s7 + $0x330] sm:$0xff]
    %v685 = vld [vmem:[%s7 + $0x338] sm:$0xff]
    %v686 = vld [vmem:[%s7 + $0x340] sm:$0xff]
    %v687 = vld [vmem:[%s7 + $0x348] sm:$0xff]
    %v688 = vld [vmem:[%s7 + $0x350] sm:$0xff]
    %v689 = vld [vmem:[%s7 + $0x358] sm:$0xff]
    %v690 = vld [vmem:[%s7 + $0x360] sm:$0xff]
    %v691 = vld [vmem:[%s7 + $0x368] sm:$0xff]
    %v692 = vld [vmem:[%s7 + $0x370] sm:$0xff]
    %v693 = vld [vmem:[%s7 + $0x378] sm:$0xff]
    %v694 = vld [vmem:[%s7 + $0x380] sm:$0xff]
    %v695 = vld [vmem:[%s7 + $0x388] sm:$0xff]
    %v696 = vld [vmem:[%s7 + $0x390] sm:$0xff]
    %v697 = vld [vmem:[%s7 + $0x398] sm:$0xff]
    %v698 = vld [vmem:[%s7 + $0x3a0] sm:$0xff]
    %v699 = vld [vmem:[%s7 + $0x3a8] sm:$0xff]
    %v700 = vld [vmem:[%s7 + $0x3b0] sm:$0xff]
    %v701 = vld [vmem:[%s7 + $0x3b8] sm:$0xff]
    %v702 = vld [vmem:[%s7 + $0x3c0] sm:$0xff]
    %v703 = vld [vmem:[%s7 + $0x3c8] sm:$0xff]
    %v704 = vld [vmem:[%s7 + $0x3d0] sm:$0xff]
    %v705 = vld [vmem:[%s7 + $0x3d8] sm:$0xff]
    %v706 = vld [vmem:[%s7 + $0x3e0] sm:$0xff]
    %v707 = vld [vmem:[%s7 + $0x3e8] sm:$0xff]
    %v708 = vld [vmem:[%s7 + $0x3f0] sm:$0xff]
    %v709 = vld [vmem:[%s7 + $0x3f8] sm:$0xff]
    %710 = vmatprep.subr.mxu0 %v583
    %711 = vmatpush1.msra.mxu0 %v582
    %712 = vmatprep.subr.mxu0 %v585
    %713 = vmatpush1.msra.mxu0 %v584
    %714 = vmatprep.subr.mxu0 %v587
    %715 = vmatpush1.msra.mxu0 %v586
    %716 = vmatprep.subr.mxu0 %v589
    %717 = vmatpush1.msra.mxu0 %v588
    %718 = vmatprep.subr.mxu0 %v591
    %719 = vmatpush1.msra.mxu0 %v590
    %720 = vmatprep.subr.mxu0 %v593
    %721 = vmatpush1.msra.mxu0 %v592
    %722 = vmatprep.subr.mxu0 %v595
    %723 = vmatpush1.msra.mxu0 %v594
    %724 = vmatprep.subr.mxu0 %v597
    %725 = vmatpush1.msra.mxu0 %v596
    %726 = vmatprep.subr.mxu0 %v599
    %727 = vmatpush1.msra.mxu0 %v598
    %728 = vmatprep.subr.mxu0 %v601
    %729 = vmatpush1.msra.mxu0 %v600
    %730 = vmatprep.subr.mxu0 %v603
    %731 = vmatpush1.msra.mxu0 %v602
    %732 = vmatprep.subr.mxu0 %v605
    %733 = vmatpush1.msra.mxu0 %v604
    %734 = vmatprep.subr.mxu0 %v607
    %735 = vmatpush1.msra.mxu0 %v606
    %736 = vmatprep.subr.mxu0 %v609
    %737 = vmatpush1.msra.mxu0 %v608
    %738 = vmatprep.subr.mxu0 %v611
    %739 = vmatpush1.msra.mxu0 %v610
    %740 = vmatprep.subr.mxu0 %v613
    %741 = vmatpush1.msra.mxu0 %v612
    %742 = vmatprep.subr.mxu0 %v615
    %743 = vmatpush1.msra.mxu0 %v614
    %744 = vmatprep.subr.mxu0 %v617
    %745 = vmatpush1.msra.mxu0 %v616
    %746 = vmatprep.subr.mxu0 %v619
    %747 = vmatpush1.msra.mxu0 %v618
    %748 = vmatprep.subr.mxu0 %v621
    %749 = vmatpush1.msra.mxu0 %v620
    %750 = vmatprep.subr.mxu0 %v623
    %751 = vmatpush1.msra.mxu0 %v622
    %752 = vmatprep.subr.mxu0 %v625
    %753 = vmatpush1.msra.mxu0 %v624
    %754 = vmatprep.subr.mxu0 %v627
    %755 = vmatpush1.msra.mxu0 %v626
    %756 = vmatprep.subr.mxu0 %v629
    %757 = vmatpush1.msra.mxu0 %v628
    %758 = vmatprep.subr.mxu0 %v631
    %759 = vmatpush1.msra.mxu0 %v630
    %760 = vmatprep.subr.mxu0 %v633
    %761 = vmatpush1.msra.mxu0 %v632
    %762 = vmatprep.subr.mxu0 %v635
    %763 = vmatpush1.msra.mxu0 %v634
    %764 = vmatprep.subr.mxu0 %v637
    %765 = vmatpush1.msra.mxu0 %v636
    %766 = vmatprep.subr.mxu0 %v639
    %767 = vmatpush1.msra.mxu0 %v638
    %768 = vmatprep.subr.mxu0 %v641
    %769 = vmatpush1.msra.mxu0 %v640
    %770 = vmatprep.subr.mxu0 %v643
    %771 = vmatpush1.msra.mxu0 %v642
    %772 = vmatprep.subr.mxu0 %v645
    %773 = vmatpush1.msra.mxu0 %v644
    %774 = vmatprep.mubr.f32.mxu0 %v566
    %775 = vmatmul.mubr.f32.gmra.mrb[0].mxu0 %v574
    %v776 = vpop.f32.mrb[0].mxu0
    %v777 = vadd.f32 0.0, %v776
    %v778 = vpop.f32.mrb[0].mxu0
    %v779 = vadd.f32 0.0, %v778
    %780 = vmatprep.mubr.f32.mxu0 %v567
    %781 = vmatmul.mubr.f32.gmra.mrb[0].mxu0 %v575
    %v782 = vpop.f32.mrb[0].mxu0
    %v783 = vadd.f32 0.0, %v782
    %v784 = vpop.f32.mrb[0].mxu0
    %v785 = vadd.f32 0.0, %v784
    %786 = vdwg.mxu0
    %787 = vmatprep.subr.mxu0 %v647
    %788 = vmatpush1.msra.mxu0 %v646
    %789 = vmatprep.subr.mxu0 %v649
    %790 = vmatpush1.msra.mxu0 %v648
    %791 = vmatprep.subr.mxu0 %v651
    %792 = vmatpush1.msra.mxu0 %v650
    %793 = vmatprep.subr.mxu0 %v653
    %794 = vmatpush1.msra.mxu0 %v652
    %795 = vmatprep.subr.mxu0 %v655
    %796 = vmatpush1.msra.mxu0 %v654
    %797 = vmatprep.subr.mxu0 %v657
    %798 = vmatpush1.msra.mxu0 %v656
    %799 = vmatprep.subr.mxu0 %v659
    %800 = vmatpush1.msra.mxu0 %v658
    %801 = vmatprep.subr.mxu0 %v661
    %802 = vmatpush1.msra.mxu0 %v660
    %803 = vmatprep.subr.mxu0 %v663
    %804 = vmatpush1.msra.mxu0 %v662
    %805 = vmatprep.subr.mxu0 %v665
    %806 = vmatpush1.msra.mxu0 %v664
    %807 = vmatprep.subr.mxu0 %v667
    %808 = vmatpush1.msra.mxu0 %v666
    %809 = vmatprep.subr.mxu0 %v669
    %810 = vmatpush1.msra.mxu0 %v668
    %811 = vmatprep.subr.mxu0 %v671
    %812 = vmatpush1.msra.mxu0 %v670
    %813 = vmatprep.subr.mxu0 %v673
    %814 = vmatpush1.msra.mxu0 %v672
    %815 = vmatprep.subr.mxu0 %v675
    %816 = vmatpush1.msra.mxu0 %v674
    %817 = vmatprep.subr.mxu0 %v677
    %818 = vmatpush1.msra.mxu0 %v676
    %819 = vmatprep.subr.mxu0 %v679
    %820 = vmatpush1.msra.mxu0 %v678
    %821 = vmatprep.subr.mxu0 %v681
    %822 = vmatpush1.msra.mxu0 %v680
    %823 = vmatprep.subr.mxu0 %v683
    %824 = vmatpush1.msra.mxu0 %v682
    %825 = vmatprep.subr.mxu0 %v685
    %826 = vmatpush1.msra.mxu0 %v684
    %827 = vmatprep.subr.mxu0 %v687
    %828 = vmatpush1.msra.mxu0 %v686
    %829 = vmatprep.subr.mxu0 %v689
    %830 = vmatpush1.msra.mxu0 %v688
    %831 = vmatprep.subr.mxu0 %v691
    %832 = vmatpush1.msra.mxu0 %v690
    %833 = vmatprep.subr.mxu0 %v693
    %834 = vmatpush1.msra.mxu0 %v692
    %835 = vmatprep.subr.mxu0 %v695
    %836 = vmatpush1.msra.mxu0 %v694
    %837 = vmatprep.subr.mxu0 %v697
    %838 = vmatpush1.msra.mxu0 %v696
    %839 = vmatprep.subr.mxu0 %v699
    %840 = vmatpush1.msra.mxu0 %v698
    %841 = vmatprep.subr.mxu0 %v701
    %842 = vmatpush1.msra.mxu0 %v700
    %843 = vmatprep.subr.mxu0 %v703
    %844 = vmatpush1.msra.mxu0 %v702
    %845 = vmatprep.subr.mxu0 %v705
    %846 = vmatpush1.msra.mxu0 %v704
    %847 = vmatprep.subr.mxu0 %v707
    %848 = vmatpush1.msra.mxu0 %v706
    %849 = vmatprep.subr.mxu0 %v709
    %850 = vmatpush1.msra.mxu0 %v708
    %851 = vmatprep.mubr.f32.mxu0 %v580
    %852 = vmatmul.mubr.f32.gmra.mrb[0].mxu0 %v568
    %v853 = vpop.f32.mrb[0].mxu0
    %v854 = vadd.f32 %v777, %v853
    %v855 = vpop.f32.mrb[0].mxu0
    %v856 = vadd.f32 %v779, %v855
    %857 = vmatprep.mubr.f32.mxu0 %v581
    %858 = vmatmul.mubr.f32.gmra.mrb[0].mxu0 %v569
    %v859 = vpop.f32.mrb[0].mxu0
    %v860 = vadd.f32 %v783, %v859
    %v861 = vpop.f32.mrb[0].mxu0
    %v862 = vadd.f32 %v785, %v861
    %863 = vdwg.mxu0
    %v864 = vld [vmem:[%s8] sm:$0x3]
    %v865 = vld [vmem:[%s9] sm:$0x3]
    %v866 = vadd.f32 %v854, %v860
    %v867 = vrot.slane %v866, 4
    %v868 = vadd.f32 %v866, %v867
    %v869 = vrot.slane %v868, 2
    %v870 = vadd.f32 %v868, %v869
    %v871 = vrot.slane %v870, 1
    %v872 = vadd.f32 %v870, %v871
    %v873 = vadd.f32 %v856, %v862
    %v874 = vrot.slane %v873, 4
    %v875 = vadd.f32 %v873, %v874
    %v876 = vrot.slane %v875, 2
    %v877 = vadd.f32 %v875, %v876
    %v878 = vrot.slane %v877, 1
    %v879 = vadd.f32 %v877, %v878
    %v880 = vmul.f32 %v872, 0.0625
    %v881 = vmul.f32 %v879, 0.0625
    %v882 = vsub.f32 %v854, %v880
    %v883 = vsub.f32 %v856, %v881
    %v884 = vsub.f32 %v860, %v880
    %v885 = vsub.f32 %v862, %v881
    %v886 = vmul.f32 %v882, %v882
    %v887 = vmul.f32 %v883, %v883
    %v888 = vmul.f32 %v884, %v884
    %v889 = vmul.f32 %v885, %v885
    %v890 = vadd.f32 %v886, %v888
    %v891 = vrot.slane %v890, 4
    %v892 = vadd.f32 %v890, %v891
    %v893 = vrot.slane %v892, 2
    %v894 = vadd.f32 %v892, %v893
    %v895 = vrot.slane %v894, 1
    %v896 = vadd.f32 %v894, %v895
    %v897 = vadd.f32 %v887, %v889
    %v898 = vrot.slane %v897, 4
    %v899 = vadd.f32 %v897, %v898
    %v900 = vrot.slane %v899, 2
    %v901 = vadd.f32 %v899, %v900
    %v902 = vrot.slane %v901, 1
    %v903 = vadd.f32 %v901, %v902
    %v904 = vmul.f32 %v896, 0.0625
    %v905 = vmul.f32 %v903, 0.0625
    %v906 = vadd.f32 %v904, 1e-05
    %v907 = vadd.f32 %v905, 1e-05
    %v908 = vrsqrt.pop %v906
    %v909 = vrsqrt.pop %v907
    %v912 = vcombine.low %v908, %v909
    %v914 = vunpack.c.l.s4 1966171168
    %v915 = vunpack.c.0.s8 %v914
    %v916 = vlaneseq
    %v917 = vshrl.u32 %v916, 7
    %v918 = vsub.s32 %v915, %v917
    %v919 = vrot.slane %v912, %v918
    %v921 = vunpack.c.l.s4 1966171168
    %v922 = vunpack.c.0.s8 %v921
    %v923 = vlaneseq
    %v924 = vshrl.u32 %v923, 7
    %v925 = vsub.s32 %v922, %v924
    %v926 = vrot.slane %v919, %v925
    %v928 = vmul.f32 %v864, %v926
    %v930 = vlaneseq
    %v931 = vshrl.u32 %v930, 7
    %v932 = vsub.s32 0, %v931
    %v933 = vrot.slane %v928, %v932
    %v934 = vlaneseq
    %v935 = vshrl.u32 %v934, 7
    %v936 = vsub.s32 1, %v935
    %v937 = vrot.slane %v928, %v936
    %v940 = vmul.f32 %v882, %v933
    %v941 = vmul.f32 %v883, %v937
    %v942 = vmul.f32 %v884, %v933
    %v943 = vmul.f32 %v885, %v937
    %v945 = vlaneseq
    %v946 = vshrl.u32 %v945, 7
    %v947 = vsub.s32 0, %v946
    %v948 = vrot.slane %v865, %v947
    %v949 = vlaneseq
    %v950 = vshrl.u32 %v949, 7
    %v951 = vsub.s32 1, %v950
    %v952 = vrot.slane %v865, %v951
    %v955 = vadd.f32 %v940, %v948
    %v956 = vadd.f32 %v941, %v952
    %v957 = vadd.f32 %v942, %v948
    %v958 = vadd.f32 %v943, %v952
    %v959 = vmax.f32 %v955, 0.0
    %v960 = vmax.f32 %v956, 0.0
    %v961 = vmax.f32 %v957, 0.0
    %v962 = vmax.f32 %v958, 0.0
    %v963 = vld [vmem:[%s11] sm:$0x1]
    %v964 = vld [vmem:[%s10] sm:$0xff]
    %v965 = vld [vmem:[%s10 + $0x8] sm:$0xff]
    %v966 = vld [vmem:[%s10 + $0x10] sm:$0xff]
    %v967 = vld [vmem:[%s10 + $0x18] sm:$0xff]
    %v968 = vld [vmem:[%s10 + $0x20] sm:$0xff]
    %v969 = vld [vmem:[%s10 + $0x28] sm:$0xff]
    %v970 = vld [vmem:[%s10 + $0x30] sm:$0xff]
    %v971 = vld [vmem:[%s10 + $0x38] sm:$0xff]
    %v972 = vld [vmem:[%s10 + $0x40] sm:$0xff]
    %v973 = vld [vmem:[%s10 + $0x48] sm:$0xff]
    %v974 = vld [vmem:[%s10 + $0x50] sm:$0xff]
    %v975 = vld [vmem:[%s10 + $0x58] sm:$0xff]
    %v976 = vld [vmem:[%s10 + $0x60] sm:$0xff]
    %v977 = vld [vmem:[%s10 + $0x68] sm:$0xff]
    %v978 = vld [vmem:[%s10 + $0x70] sm:$0xff]
    %v979 = vld [vmem:[%s10 + $0x78] sm:$0xff]
    %v980 = vld [vmem:[%s10 + $0x80] sm:$0xff]
    %v981 = vld [vmem:[%s10 + $0x88] sm:$0xff]
    %v982 = vld [vmem:[%s10 + $0x90] sm:$0xff]
    %v983 = vld [vmem:[%s10 + $0x98] sm:$0xff]
    %v984 = vld [vmem:[%s10 + $0xa0] sm:$0xff]
    %v985 = vld [vmem:[%s10 + $0xa8] sm:$0xff]
    %v986 = vld [vmem:[%s10 + $0xb0] sm:$0xff]
    %v987 = vld [vmem:[%s10 + $0xb8] sm:$0xff]
    %v988 = vld [vmem:[%s10 + $0xc0] sm:$0xff]
    %v989 = vld [vmem:[%s10 + $0xc8] sm:$0xff]
    %v990 = vld [vmem:[%s10 + $0xd0] sm:$0xff]
    %v991 = vld [vmem:[%s10 + $0xd8] sm:$0xff]
    %v992 = vld [vmem:[%s10 + $0xe0] sm:$0xff]
    %v993 = vld [vmem:[%s10 + $0xe8] sm:$0xff]
    %v994 = vld [vmem:[%s10 + $0xf0] sm:$0xff]
    %v995 = vld [vmem:[%s10 + $0xf8] sm:$0xff]
    %v1000 = vrot.slane %v961, 7
    %vm1001 = vcmask 1041409
    %v1002 = vsel %vm1001, %v1000, %v959
    %v1003 = vrot.slane %v962, 7
    %v1004 = vsel %vm1001, %v1003, %v960
    %1007 = vmatprep.subr.mxu0 0.0
    %1008 = vmatpush1.msra.mxu0 %v964
    %1009 = vmatprep.subr.mxu0 0.0
    %1010 = vmatpush1.msra.mxu0 %v965
    %1011 = vmatprep.subr.mxu0 0.0
    %1012 = vmatpush1.msra.mxu0 %v966
    %1013 = vmatprep.subr.mxu0 0.0
    %1014 = vmatpush1.msra.mxu0 %v967
    %1015 = vmatprep.subr.mxu0 0.0
    %1016 = vmatpush1.msra.mxu0 %v968
    %1017 = vmatprep.subr.mxu0 0.0
    %1018 = vmatpush1.msra.mxu0 %v969
    %1019 = vmatprep.subr.mxu0 0.0
    %1020 = vmatpush1.msra.mxu0 %v970
    %1021 = vmatprep.subr.mxu0 0.0
    %1022 = vmatpush1.msra.mxu0 %v971
    %1023 = vmatprep.subr.mxu0 0.0
    %1024 = vmatpush1.msra.mxu0 %v972
    %1025 = vmatprep.subr.mxu0 0.0
    %1026 = vmatpush1.msra.mxu0 %v973
    %1027 = vmatprep.subr.mxu0 0.0
    %1028 = vmatpush1.msra.mxu0 %v974
    %1029 = vmatprep.subr.mxu0 0.0
    %1030 = vmatpush1.msra.mxu0 %v975
    %1031 = vmatprep.subr.mxu0 0.0
    %1032 = vmatpush1.msra.mxu0 %v976
    %1033 = vmatprep.subr.mxu0 0.0
    %1034 = vmatpush1.msra.mxu0 %v977
    %1035 = vmatprep.subr.mxu0 0.0
    %1036 = vmatpush1.msra.mxu0 %v978
    %1037 = vmatprep.subr.mxu0 0.0
    %1038 = vmatpush1.msra.mxu0 %v979
    %1039 = vmatprep.subr.mxu0 0.0
    %1040 = vmatpush1.msra.mxu0 %v980
    %1041 = vmatprep.subr.mxu0 0.0
    %1042 = vmatpush1.msra.mxu0 %v981
    %1043 = vmatprep.subr.mxu0 0.0
    %1044 = vmatpush1.msra.mxu0 %v982
    %1045 = vmatprep.subr.mxu0 0.0
    %1046 = vmatpush1.msra.mxu0 %v983
    %1047 = vmatprep.subr.mxu0 0.0
    %1048 = vmatpush1.msra.mxu0 %v984
    %1049 = vmatprep.subr.mxu0 0.0
    %1050 = vmatpush1.msra.mxu0 %v985
    %1051 = vmatprep.subr.mxu0 0.0
    %1052 = vmatpush1.msra.mxu0 %v986
    %1053 = vmatprep.subr.mxu0 0.0
    %1054 = vmatpush1.msra.mxu0 %v987
    %1055 = vmatprep.subr.mxu0 0.0
    %1056 = vmatpush1.msra.mxu0 %v988
    %1057 = vmatprep.subr.mxu0 0.0
    %1058 = vmatpush1.msra.mxu0 %v989
    %1059 = vmatprep.subr.mxu0 0.0
    %1060 = vmatpush1.msra.mxu0 %v990
    %1061 = vmatprep.subr.mxu0 0.0
    %1062 = vmatpush1.msra.mxu0 %v991
    %1063 = vmatprep.subr.mxu0 0.0
    %1064 = vmatpush1.msra.mxu0 %v992
    %1065 = vmatprep.subr.mxu0 0.0
    %1066 = vmatpush1.msra.mxu0 %v993
    %1067 = vmatprep.subr.mxu0 0.0
    %1068 = vmatpush1.msra.mxu0 %v994
    %1069 = vmatprep.subr.mxu0 0.0
    %1070 = vmatpush1.msra.mxu0 %v995
    %1071 = vmatprep.mubr.f32.mxu0 %v1004
    %1072 = vmatmul.mubr.f32.gmra.mrb[0].mxu0 %v1002
    %v1073 = vpop.f32.mrb[0].mxu0
    %v1074 = vadd.f32 0.0, %v1073
    %v1075 = vpop.f32.mrb[0].mxu0
    %1076 = vdwg.mxu0
    %v1078 = vlaneseq
    %v1079 = vshrl.u32 %v1078, 7
    %v1080 = vsub.s32 0, %v1079
    %v1081 = vrot.slane %v963, %v1080
    %v1083 = vadd.f32 %v1081, %v1074
    %s1084 = scalar_lea.vmem %s10, 256
    %v1085 = vld [vmem:[%s1084] sm:$0xff]
    %v1086 = vld [vmem:[%s1084 + $0x8] sm:$0xff]
    %v1087 = vld [vmem:[%s1084 + $0x10] sm:$0xff]
    %v1088 = vld [vmem:[%s1084 + $0x18] sm:$0xff]
    %v1089 = vld [vmem:[%s1084 + $0x20] sm:$0xff]
    %v1090 = vld [vmem:[%s1084 + $0x28] sm:$0xff]
    %v1091 = vld [vmem:[%s1084 + $0x30] sm:$0xff]
    %v1092 = vld [vmem:[%s1084 + $0x38] sm:$0xff]
    %v1093 = vld [vmem:[%s1084 + $0x40] sm:$0xff]
    %v1094 = vld [vmem:[%s1084 + $0x48] sm:$0xff]
    %v1095 = vld [vmem:[%s1084 + $0x50] sm:$0xff]
    %v1096 = vld [vmem:[%s1084 + $0x58] sm:$0xff]
    %v1097 = vld [vmem:[%s1084 + $0x60] sm:$0xff]
    %v1098 = vld [vmem:[%s1084 + $0x68] sm:$0xff]
    %v1099 = vld [vmem:[%s1084 + $0x70] sm:$0xff]
    %v1100 = vld [vmem:[%s1084 + $0x78] sm:$0xff]
    %v1101 = vld [vmem:[%s1084 + $0x80] sm:$0xff]
    %v1102 = vld [vmem:[%s1084 + $0x88] sm:$0xff]
    %v1103 = vld [vmem:[%s1084 + $0x90] sm:$0xff]
    %v1104 = vld [vmem:[%s1084 + $0x98] sm:$0xff]
    %v1105 = vld [vmem:[%s1084 + $0xa0] sm:$0xff]
    %v1106 = vld [vmem:[%s1084 + $0xa8] sm:$0xff]
    %v1107 = vld [vmem:[%s1084 + $0xb0] sm:$0xff]
    %v1108 = vld [vmem:[%s1084 + $0xb8] sm:$0xff]
    %v1109 = vld [vmem:[%s1084 + $0xc0] sm:$0xff]
    %v1110 = vld [vmem:[%s1084 + $0xc8] sm:$0xff]
    %v1111 = vld [vmem:[%s1084 + $0xd0] sm:$0xff]
    %v1112 = vld [vmem:[%s1084 + $0xd8] sm:$0xff]
    %v1113 = vld [vmem:[%s1084 + $0xe0] sm:$0xff]
    %v1114 = vld [vmem:[%s1084 + $0xe8] sm:$0xff]
    %v1115 = vld [vmem:[%s1084 + $0xf0] sm:$0xff]
    %v1116 = vld [vmem:[%s1084 + $0xf8] sm:$0xff]
    %v1117 = vrot.slane %v959, 1
    %v1118 = vsel %vm1001, %v961, %v1117
    %v1119 = vrot.slane %v960, 1
    %v1120 = vsel %vm1001, %v962, %v1119
    %1123 = vmatprep.subr.mxu0 0.0
    %1124 = vmatpush1.msra.mxu0 %v1085
    %1125 = vmatprep.subr.mxu0 0.0
    %1126 = vmatpush1.msra.mxu0 %v1086
    %1127 = vmatprep.subr.mxu0 0.0
    %1128 = vmatpush1.msra.mxu0 %v1087
    %1129 = vmatprep.subr.mxu0 0.0
    %1130 = vmatpush1.msra.mxu0 %v1088
    %1131 = vmatprep.subr.mxu0 0.0
    %1132 = vmatpush1.msra.mxu0 %v1089
    %1133 = vmatprep.subr.mxu0 0.0
    %1134 = vmatpush1.msra.mxu0 %v1090
    %1135 = vmatprep.subr.mxu0 0.0
    %1136 = vmatpush1.msra.mxu0 %v1091
    %1137 = vmatprep.subr.mxu0 0.0
    %1138 = vmatpush1.msra.mxu0 %v1092
    %1139 = vmatprep.subr.mxu0 0.0
    %1140 = vmatpush1.msra.mxu0 %v1093
    %1141 = vmatprep.subr.mxu0 0.0
    %1142 = vmatpush1.msra.mxu0 %v1094
    %1143 = vmatprep.subr.mxu0 0.0
    %1144 = vmatpush1.msra.mxu0 %v1095
    %1145 = vmatprep.subr.mxu0 0.0
    %1146 = vmatpush1.msra.mxu0 %v1096
    %1147 = vmatprep.subr.mxu0 0.0
    %1148 = vmatpush1.msra.mxu0 %v1097
    %1149 = vmatprep.subr.mxu0 0.0
    %1150 = vmatpush1.msra.mxu0 %v1098
    %1151 = vmatprep.subr.mxu0 0.0
    %1152 = vmatpush1.msra.mxu0 %v1099
    %1153 = vmatprep.subr.mxu0 0.0
    %1154 = vmatpush1.msra.mxu0 %v1100
    %1155 = vmatprep.subr.mxu0 0.0
    %1156 = vmatpush1.msra.mxu0 %v1101
    %1157 = vmatprep.subr.mxu0 0.0
    %1158 = vmatpush1.msra.mxu0 %v1102
    %1159 = vmatprep.subr.mxu0 0.0
    %1160 = vmatpush1.msra.mxu0 %v1103
    %1161 = vmatprep.subr.mxu0 0.0
    %1162 = vmatpush1.msra.mxu0 %v1104
    %1163 = vmatprep.subr.mxu0 0.0
    %1164 = vmatpush1.msra.mxu0 %v1105
    %1165 = vmatprep.subr.mxu0 0.0
    %1166 = vmatpush1.msra.mxu0 %v1106
    %1167 = vmatprep.subr.mxu0 0.0
    %1168 = vmatpush1.msra.mxu0 %v1107
    %1169 = vmatprep.subr.mxu0 0.0
    %1170 = vmatpush1.msra.mxu0 %v1108
    %1171 = vmatprep.subr.mxu0 0.0
    %1172 = vmatpush1.msra.mxu0 %v1109
    %1173 = vmatprep.subr.mxu0 0.0
    %1174 = vmatpush1.msra.mxu0 %v1110
    %1175 = vmatprep.subr.mxu0 0.0
    %1176 = vmatpush1.msra.mxu0 %v1111
    %1177 = vmatprep.subr.mxu0 0.0
    %1178 = vmatpush1.msra.mxu0 %v1112
    %1179 = vmatprep.subr.mxu0 0.0
    %1180 = vmatpush1.msra.mxu0 %v1113
    %1181 = vmatprep.subr.mxu0 0.0
    %1182 = vmatpush1.msra.mxu0 %v1114
    %1183 = vmatprep.subr.mxu0 0.0
    %1184 = vmatpush1.msra.mxu0 %v1115
    %1185 = vmatprep.subr.mxu0 0.0
    %1186 = vmatpush1.msra.mxu0 %v1116
    %1187 = vmatprep.mubr.f32.mxu0 %v1120
    %1188 = vmatmul.mubr.f32.gmra.mrb[0].mxu0 %v1118
    %v1189 = vpop.f32.mrb[0].mxu0
    %v1190 = vadd.f32 0.0, %v1189
    %v1191 = vpop.f32.mrb[0].mxu0
    %1192 = vdwg.mxu0
    %v1193 = vadd.f32 %v1083, %v1190
    %s1194 = scalar_lea.vmem %s10, 512
    %v1195 = vld [vmem:[%s1194] sm:$0xff]
    %v1196 = vld [vmem:[%s1194 + $0x8] sm:$0xff]
    %v1197 = vld [vmem:[%s1194 + $0x10] sm:$0xff]
    %v1198 = vld [vmem:[%s1194 + $0x18] sm:$0xff]
    %v1199 = vld [vmem:[%s1194 + $0x20] sm:$0xff]
    %v1200 = vld [vmem:[%s1194 + $0x28] sm:$0xff]
    %v1201 = vld [vmem:[%s1194 + $0x30] sm:$0xff]
    %v1202 = vld [vmem:[%s1194 + $0x38] sm:$0xff]
    %v1203 = vld [vmem:[%s1194 + $0x40] sm:$0xff]
    %v1204 = vld [vmem:[%s1194 + $0x48] sm:$0xff]
    %v1205 = vld [vmem:[%s1194 + $0x50] sm:$0xff]
    %v1206 = vld [vmem:[%s1194 + $0x58] sm:$0xff]
    %v1207 = vld [vmem:[%s1194 + $0x60] sm:$0xff]
    %v1208 = vld [vmem:[%s1194 + $0x68] sm:$0xff]
    %v1209 = vld [vmem:[%s1194 + $0x70] sm:$0xff]
    %v1210 = vld [vmem:[%s1194 + $0x78] sm:$0xff]
    %v1211 = vld [vmem:[%s1194 + $0x80] sm:$0xff]
    %v1212 = vld [vmem:[%s1194 + $0x88] sm:$0xff]
    %v1213 = vld [vmem:[%s1194 + $0x90] sm:$0xff]
    %v1214 = vld [vmem:[%s1194 + $0x98] sm:$0xff]
    %v1215 = vld [vmem:[%s1194 + $0xa0] sm:$0xff]
    %v1216 = vld [vmem:[%s1194 + $0xa8] sm:$0xff]
    %v1217 = vld [vmem:[%s1194 + $0xb0] sm:$0xff]
    %v1218 = vld [vmem:[%s1194 + $0xb8] sm:$0xff]
    %v1219 = vld [vmem:[%s1194 + $0xc0] sm:$0xff]
    %v1220 = vld [vmem:[%s1194 + $0xc8] sm:$0xff]
    %v1221 = vld [vmem:[%s1194 + $0xd0] sm:$0xff]
    %v1222 = vld [vmem:[%s1194 + $0xd8] sm:$0xff]
    %v1223 = vld [vmem:[%s1194 + $0xe0] sm:$0xff]
    %v1224 = vld [vmem:[%s1194 + $0xe8] sm:$0xff]
    %v1225 = vld [vmem:[%s1194 + $0xf0] sm:$0xff]
    %v1226 = vld [vmem:[%s1194 + $0xf8] sm:$0xff]
    %v1227 = vrot.slane %v959, 2
    %v1228 = vrot.slane %v961, 1
    %v1229 = vsel %vm1001, %v1228, %v1227
    %v1230 = vrot.slane %v960, 2
    %v1231 = vrot.slane %v962, 1
    %v1232 = vsel %vm1001, %v1231, %v1230
    %1235 = vmatprep.subr.mxu0 0.0
    %1236 = vmatpush1.msra.mxu0 %v1195
    %1237 = vmatprep.subr.mxu0 0.0
    %1238 = vmatpush1.msra.mxu0 %v1196
    %1239 = vmatprep.subr.mxu0 0.0
    %1240 = vmatpush1.msra.mxu0 %v1197
    %1241 = vmatprep.subr.mxu0 0.0
    %1242 = vmatpush1.msra.mxu0 %v1198
    %1243 = vmatprep.subr.mxu0 0.0
    %1244 = vmatpush1.msra.mxu0 %v1199
    %1245 = vmatprep.subr.mxu0 0.0
    %1246 = vmatpush1.msra.mxu0 %v1200
    %1247 = vmatprep.subr.mxu0 0.0
    %1248 = vmatpush1.msra.mxu0 %v1201
    %1249 = vmatprep.subr.mxu0 0.0
    %1250 = vmatpush1.msra.mxu0 %v1202
    %1251 = vmatprep.subr.mxu0 0.0
    %1252 = vmatpush1.msra.mxu0 %v1203
    %1253 = vmatprep.subr.mxu0 0.0
    %1254 = vmatpush1.msra.mxu0 %v1204
    %1255 = vmatprep.subr.mxu0 0.0
    %1256 = vmatpush1.msra.mxu0 %v1205
    %1257 = vmatprep.subr.mxu0 0.0
    %1258 = vmatpush1.msra.mxu0 %v1206
    %1259 = vmatprep.subr.mxu0 0.0
    %1260 = vmatpush1.msra.mxu0 %v1207
    %1261 = vmatprep.subr.mxu0 0.0
    %1262 = vmatpush1.msra.mxu0 %v1208
    %1263 = vmatprep.subr.mxu0 0.0
    %1264 = vmatpush1.msra.mxu0 %v1209
    %1265 = vmatprep.subr.mxu0 0.0
    %1266 = vmatpush1.msra.mxu0 %v1210
    %1267 = vmatprep.subr.mxu0 0.0
    %1268 = vmatpush1.msra.mxu0 %v1211
    %1269 = vmatprep.subr.mxu0 0.0
    %1270 = vmatpush1.msra.mxu0 %v1212
    %1271 = vmatprep.subr.mxu0 0.0
    %1272 = vmatpush1.msra.mxu0 %v1213
    %1273 = vmatprep.subr.mxu0 0.0
    %1274 = vmatpush1.msra.mxu0 %v1214
    %1275 = vmatprep.subr.mxu0 0.0
    %1276 = vmatpush1.msra.mxu0 %v1215
    %1277 = vmatprep.subr.mxu0 0.0
    %1278 = vmatpush1.msra.mxu0 %v1216
    %1279 = vmatprep.subr.mxu0 0.0
    %1280 = vmatpush1.msra.mxu0 %v1217
    %1281 = vmatprep.subr.mxu0 0.0
    %1282 = vmatpush1.msra.mxu0 %v1218
    %1283 = vmatprep.subr.mxu0 0.0
    %1284 = vmatpush1.msra.mxu0 %v1219
    %1285 = vmatprep.subr.mxu0 0.0
    %1286 = vmatpush1.msra.mxu0 %v1220
    %1287 = vmatprep.subr.mxu0 0.0
    %1288 = vmatpush1.msra.mxu0 %v1221
    %1289 = vmatprep.subr.mxu0 0.0
    %1290 = vmatpush1.msra.mxu0 %v1222
    %1291 = vmatprep.subr.mxu0 0.0
    %1292 = vmatpush1.msra.mxu0 %v1223
    %1293 = vmatprep.subr.mxu0 0.0
    %1294 = vmatpush1.msra.mxu0 %v1224
    %1295 = vmatprep.subr.mxu0 0.0
    %1296 = vmatpush1.msra.mxu0 %v1225
    %1297 = vmatprep.subr.mxu0 0.0
    %1298 = vmatpush1.msra.mxu0 %v1226
    %1299 = vmatprep.mubr.f32.mxu0 %v1232
    %1300 = vmatmul.mubr.f32.gmra.mrb[0].mxu0 %v1229
    %v1301 = vpop.f32.mrb[0].mxu0
    %v1302 = vadd.f32 0.0, %v1301
    %v1303 = vpop.f32.mrb[0].mxu0
    %1304 = vdwg.mxu0
    %v1305 = vadd.f32 %v1193, %v1302
    %s1306 = scalar_lea.vmem %s10, 768
    %v1307 = vld [vmem:[%s1306] sm:$0xff]
    %v1308 = vld [vmem:[%s1306 + $0x8] sm:$0xff]
    %v1309 = vld [vmem:[%s1306 + $0x10] sm:$0xff]
    %v1310 = vld [vmem:[%s1306 + $0x18] sm:$0xff]
    %v1311 = vld [vmem:[%s1306 + $0x20] sm:$0xff]
    %v1312 = vld [vmem:[%s1306 + $0x28] sm:$0xff]
    %v1313 = vld [vmem:[%s1306 + $0x30] sm:$0xff]
    %v1314 = vld [vmem:[%s1306 + $0x38] sm:$0xff]
    %v1315 = vld [vmem:[%s1306 + $0x40] sm:$0xff]
    %v1316 = vld [vmem:[%s1306 + $0x48] sm:$0xff]
    %v1317 = vld [vmem:[%s1306 + $0x50] sm:$0xff]
    %v1318 = vld [vmem:[%s1306 + $0x58] sm:$0xff]
    %v1319 = vld [vmem:[%s1306 + $0x60] sm:$0xff]
    %v1320 = vld [vmem:[%s1306 + $0x68] sm:$0xff]
    %v1321 = vld [vmem:[%s1306 + $0x70] sm:$0xff]
    %v1322 = vld [vmem:[%s1306 + $0x78] sm:$0xff]
    %v1323 = vld [vmem:[%s1306 + $0x80] sm:$0xff]
    %v1324 = vld [vmem:[%s1306 + $0x88] sm:$0xff]
    %v1325 = vld [vmem:[%s1306 + $0x90] sm:$0xff]
    %v1326 = vld [vmem:[%s1306 + $0x98] sm:$0xff]
    %v1327 = vld [vmem:[%s1306 + $0xa0] sm:$0xff]
    %v1328 = vld [vmem:[%s1306 + $0xa8] sm:$0xff]
    %v1329 = vld [vmem:[%s1306 + $0xb0] sm:$0xff]
    %v1330 = vld [vmem:[%s1306 + $0xb8] sm:$0xff]
    %v1331 = vld [vmem:[%s1306 + $0xc0] sm:$0xff]
    %v1332 = vld [vmem:[%s1306 + $0xc8] sm:$0xff]
    %v1333 = vld [vmem:[%s1306 + $0xd0] sm:$0xff]
    %v1334 = vld [vmem:[%s1306 + $0xd8] sm:$0xff]
    %v1335 = vld [vmem:[%s1306 + $0xe0] sm:$0xff]
    %v1336 = vld [vmem:[%s1306 + $0xe8] sm:$0xff]
    %v1337 = vld [vmem:[%s1306 + $0xf0] sm:$0xff]
    %v1338 = vld [vmem:[%s1306 + $0xf8] sm:$0xff]
    %v1339 = vrot.slane %v959, 3
    %v1340 = vrot.slane %v961, 2
    %v1341 = vsel %vm1001, %v1340, %v1339
    %v1342 = vrot.slane %v960, 3
    %v1343 = vrot.slane %v962, 2
    %v1344 = vsel %vm1001, %v1343, %v1342
    %1347 = vmatprep.subr.mxu0 0.0
    %1348 = vmatpush1.msra.mxu0 %v1307
    %1349 = vmatprep.subr.mxu0 0.0
    %1350 = vmatpush1.msra.mxu0 %v1308
    %1351 = vmatprep.subr.mxu0 0.0
    %1352 = vmatpush1.msra.mxu0 %v1309
    %1353 = vmatprep.subr.mxu0 0.0
    %1354 = vmatpush1.msra.mxu0 %v1310
    %1355 = vmatprep.subr.mxu0 0.0
    %1356 = vmatpush1.msra.mxu0 %v1311
    %1357 = vmatprep.subr.mxu0 0.0
    %1358 = vmatpush1.msra.mxu0 %v1312
    %1359 = vmatprep.subr.mxu0 0.0
    %1360 = vmatpush1.msra.mxu0 %v1313
    %1361 = vmatprep.subr.mxu0 0.0
    %1362 = vmatpush1.msra.mxu0 %v1314
    %1363 = vmatprep.subr.mxu0 0.0
    %1364 = vmatpush1.msra.mxu0 %v1315
    %1365 = vmatprep.subr.mxu0 0.0
    %1366 = vmatpush1.msra.mxu0 %v1316
    %1367 = vmatprep.subr.mxu0 0.0
    %1368 = vmatpush1.msra.mxu0 %v1317
    %1369 = vmatprep.subr.mxu0 0.0
    %1370 = vmatpush1.msra.mxu0 %v1318
    %1371 = vmatprep.subr.mxu0 0.0
    %1372 = vmatpush1.msra.mxu0 %v1319
    %1373 = vmatprep.subr.mxu0 0.0
    %1374 = vmatpush1.msra.mxu0 %v1320
    %1375 = vmatprep.subr.mxu0 0.0
    %1376 = vmatpush1.msra.mxu0 %v1321
    %1377 = vmatprep.subr.mxu0 0.0
    %1378 = vmatpush1.msra.mxu0 %v1322
    %1379 = vmatprep.subr.mxu0 0.0
    %1380 = vmatpush1.msra.mxu0 %v1323
    %1381 = vmatprep.subr.mxu0 0.0
    %1382 = vmatpush1.msra.mxu0 %v1324
    %1383 = vmatprep.subr.mxu0 0.0
    %1384 = vmatpush1.msra.mxu0 %v1325
    %1385 = vmatprep.subr.mxu0 0.0
    %1386 = vmatpush1.msra.mxu0 %v1326
    %1387 = vmatprep.subr.mxu0 0.0
    %1388 = vmatpush1.msra.mxu0 %v1327
    %1389 = vmatprep.subr.mxu0 0.0
    %1390 = vmatpush1.msra.mxu0 %v1328
    %1391 = vmatprep.subr.mxu0 0.0
    %1392 = vmatpush1.msra.mxu0 %v1329
    %1393 = vmatprep.subr.mxu0 0.0
    %1394 = vmatpush1.msra.mxu0 %v1330
    %1395 = vmatprep.subr.mxu0 0.0
    %1396 = vmatpush1.msra.mxu0 %v1331
    %1397 = vmatprep.subr.mxu0 0.0
    %1398 = vmatpush1.msra.mxu0 %v1332
    %1399 = vmatprep.subr.mxu0 0.0
    %1400 = vmatpush1.msra.mxu0 %v1333
    %1401 = vmatprep.subr.mxu0 0.0
    %1402 = vmatpush1.msra.mxu0 %v1334
    %1403 = vmatprep.subr.mxu0 0.0
    %1404 = vmatpush1.msra.mxu0 %v1335
    %1405 = vmatprep.subr.mxu0 0.0
    %1406 = vmatpush1.msra.mxu0 %v1336
    %1407 = vmatprep.subr.mxu0 0.0
    %1408 = vmatpush1.msra.mxu0 %v1337
    %1409 = vmatprep.subr.mxu0 0.0
    %1410 = vmatpush1.msra.mxu0 %v1338
    %1411 = vmatprep.mubr.f32.mxu0 %v1344
    %1412 = vmatmul.mubr.f32.gmra.mrb[0].mxu0 %v1341
    %v1413 = vpop.f32.mrb[0].mxu0
    %v1414 = vadd.f32 0.0, %v1413
    %v1415 = vpop.f32.mrb[0].mxu0
    %1416 = vdwg.mxu0
    %v1417 = vadd.f32 %v1305, %v1414
    %s1418 = scalar_lea.vmem %s10, 1024
    %v1419 = vld [vmem:[%s1418] sm:$0xff]
    %v1420 = vld [vmem:[%s1418 + $0x8] sm:$0xff]
    %v1421 = vld [vmem:[%s1418 + $0x10] sm:$0xff]
    %v1422 = vld [vmem:[%s1418 + $0x18] sm:$0xff]
    %v1423 = vld [vmem:[%s1418 + $0x20] sm:$0xff]
    %v1424 = vld [vmem:[%s1418 + $0x28] sm:$0xff]
    %v1425 = vld [vmem:[%s1418 + $0x30] sm:$0xff]
    %v1426 = vld [vmem:[%s1418 + $0x38] sm:$0xff]
    %v1427 = vld [vmem:[%s1418 + $0x40] sm:$0xff]
    %v1428 = vld [vmem:[%s1418 + $0x48] sm:$0xff]
    %v1429 = vld [vmem:[%s1418 + $0x50] sm:$0xff]
    %v1430 = vld [vmem:[%s1418 + $0x58] sm:$0xff]
    %v1431 = vld [vmem:[%s1418 + $0x60] sm:$0xff]
    %v1432 = vld [vmem:[%s1418 + $0x68] sm:$0xff]
    %v1433 = vld [vmem:[%s1418 + $0x70] sm:$0xff]
    %v1434 = vld [vmem:[%s1418 + $0x78] sm:$0xff]
    %v1435 = vld [vmem:[%s1418 + $0x80] sm:$0xff]
    %v1436 = vld [vmem:[%s1418 + $0x88] sm:$0xff]
    %v1437 = vld [vmem:[%s1418 + $0x90] sm:$0xff]
    %v1438 = vld [vmem:[%s1418 + $0x98] sm:$0xff]
    %v1439 = vld [vmem:[%s1418 + $0xa0] sm:$0xff]
    %v1440 = vld [vmem:[%s1418 + $0xa8] sm:$0xff]
    %v1441 = vld [vmem:[%s1418 + $0xb0] sm:$0xff]
    %v1442 = vld [vmem:[%s1418 + $0xb8] sm:$0xff]
    %v1443 = vld [vmem:[%s1418 + $0xc0] sm:$0xff]
    %v1444 = vld [vmem:[%s1418 + $0xc8] sm:$0xff]
    %v1445 = vld [vmem:[%s1418 + $0xd0] sm:$0xff]
    %v1446 = vld [vmem:[%s1418 + $0xd8] sm:$0xff]
    %v1447 = vld [vmem:[%s1418 + $0xe0] sm:$0xff]
    %v1448 = vld [vmem:[%s1418 + $0xe8] sm:$0xff]
    %v1449 = vld [vmem:[%s1418 + $0xf0] sm:$0xff]
    %v1450 = vld [vmem:[%s1418 + $0xf8] sm:$0xff]
    %v1451 = vrot.slane %v959, 4
    %v1452 = vrot.slane %v961, 3
    %v1453 = vsel %vm1001, %v1452, %v1451
    %v1454 = vrot.slane %v960, 4
    %v1455 = vrot.slane %v962, 3
    %v1456 = vsel %vm1001, %v1455, %v1454
    %1459 = vmatprep.subr.mxu0 0.0
    %1460 = vmatpush1.msra.mxu0 %v1419
    %1461 = vmatprep.subr.mxu0 0.0
    %1462 = vmatpush1.msra.mxu0 %v1420
    %1463 = vmatprep.subr.mxu0 0.0
    %1464 = vmatpush1.msra.mxu0 %v1421
    %1465 = vmatprep.subr.mxu0 0.0
    %1466 = vmatpush1.msra.mxu0 %v1422
    %1467 = vmatprep.subr.mxu0 0.0
    %1468 = vmatpush1.msra.mxu0 %v1423
    %1469 = vmatprep.subr.mxu0 0.0
    %1470 = vmatpush1.msra.mxu0 %v1424
    %1471 = vmatprep.subr.mxu0 0.0
    %1472 = vmatpush1.msra.mxu0 %v1425
    %1473 = vmatprep.subr.mxu0 0.0
    %1474 = vmatpush1.msra.mxu0 %v1426
    %1475 = vmatprep.subr.mxu0 0.0
    %1476 = vmatpush1.msra.mxu0 %v1427
    %1477 = vmatprep.subr.mxu0 0.0
    %1478 = vmatpush1.msra.mxu0 %v1428
    %1479 = vmatprep.subr.mxu0 0.0
    %1480 = vmatpush1.msra.mxu0 %v1429
    %1481 = vmatprep.subr.mxu0 0.0
    %1482 = vmatpush1.msra.mxu0 %v1430
    %1483 = vmatprep.subr.mxu0 0.0
    %1484 = vmatpush1.msra.mxu0 %v1431
    %1485 = vmatprep.subr.mxu0 0.0
    %1486 = vmatpush1.msra.mxu0 %v1432
    %1487 = vmatprep.subr.mxu0 0.0
    %1488 = vmatpush1.msra.mxu0 %v1433
    %1489 = vmatprep.subr.mxu0 0.0
    %1490 = vmatpush1.msra.mxu0 %v1434
    %1491 = vmatprep.subr.mxu0 0.0
    %1492 = vmatpush1.msra.mxu0 %v1435
    %1493 = vmatprep.subr.mxu0 0.0
    %1494 = vmatpush1.msra.mxu0 %v1436
    %1495 = vmatprep.subr.mxu0 0.0
    %1496 = vmatpush1.msra.mxu0 %v1437
    %1497 = vmatprep.subr.mxu0 0.0
    %1498 = vmatpush1.msra.mxu0 %v1438
    %1499 = vmatprep.subr.mxu0 0.0
    %1500 = vmatpush1.msra.mxu0 %v1439
    %1501 = vmatprep.subr.mxu0 0.0
    %1502 = vmatpush1.msra.mxu0 %v1440
    %1503 = vmatprep.subr.mxu0 0.0
    %1504 = vmatpush1.msra.mxu0 %v1441
    %1505 = vmatprep.subr.mxu0 0.0
    %1506 = vmatpush1.msra.mxu0 %v1442
    %1507 = vmatprep.subr.mxu0 0.0
    %1508 = vmatpush1.msra.mxu0 %v1443
    %1509 = vmatprep.subr.mxu0 0.0
    %1510 = vmatpush1.msra.mxu0 %v1444
    %1511 = vmatprep.subr.mxu0 0.0
    %1512 = vmatpush1.msra.mxu0 %v1445
    %1513 = vmatprep.subr.mxu0 0.0
    %1514 = vmatpush1.msra.mxu0 %v1446
    %1515 = vmatprep.subr.mxu0 0.0
    %1516 = vmatpush1.msra.mxu0 %v1447
    %1517 = vmatprep.subr.mxu0 0.0
    %1518 = vmatpush1.msra.mxu0 %v1448
    %1519 = vmatprep.subr.mxu0 0.0
    %1520 = vmatpush1.msra.mxu0 %v1449
    %1521 = vmatprep.subr.mxu0 0.0
    %1522 = vmatpush1.msra.mxu0 %v1450
    %1523 = vmatprep.mubr.f32.mxu0 %v1456
    %1524 = vmatmul.mubr.f32.gmra.mrb[0].mxu0 %v1453
    %v1525 = vpop.f32.mrb[0].mxu0
    %v1526 = vadd.f32 0.0, %v1525
    %v1527 = vpop.f32.mrb[0].mxu0
    %1528 = vdwg.mxu0
    %v1529 = vadd.f32 %v1417, %v1526
    %s1530 = scalar_lea.vmem %s10, 1280
    %v1531 = vld [vmem:[%s1530] sm:$0xff]
    %v1532 = vld [vmem:[%s1530 + $0x8] sm:$0xff]
    %v1533 = vld [vmem:[%s1530 + $0x10] sm:$0xff]
    %v1534 = vld [vmem:[%s1530 + $0x18] sm:$0xff]
    %v1535 = vld [vmem:[%s1530 + $0x20] sm:$0xff]
    %v1536 = vld [vmem:[%s1530 + $0x28] sm:$0xff]
    %v1537 = vld [vmem:[%s1530 + $0x30] sm:$0xff]
    %v1538 = vld [vmem:[%s1530 + $0x38] sm:$0xff]
    %v1539 = vld [vmem:[%s1530 + $0x40] sm:$0xff]
    %v1540 = vld [vmem:[%s1530 + $0x48] sm:$0xff]
    %v1541 = vld [vmem:[%s1530 + $0x50] sm:$0xff]
    %v1542 = vld [vmem:[%s1530 + $0x58] sm:$0xff]
    %v1543 = vld [vmem:[%s1530 + $0x60] sm:$0xff]
    %v1544 = vld [vmem:[%s1530 + $0x68] sm:$0xff]
    %v1545 = vld [vmem:[%s1530 + $0x70] sm:$0xff]
    %v1546 = vld [vmem:[%s1530 + $0x78] sm:$0xff]
    %v1547 = vld [vmem:[%s1530 + $0x80] sm:$0xff]
    %v1548 = vld [vmem:[%s1530 + $0x88] sm:$0xff]
    %v1549 = vld [vmem:[%s1530 + $0x90] sm:$0xff]
    %v1550 = vld [vmem:[%s1530 + $0x98] sm:$0xff]
    %v1551 = vld [vmem:[%s1530 + $0xa0] sm:$0xff]
    %v1552 = vld [vmem:[%s1530 + $0xa8] sm:$0xff]
    %v1553 = vld [vmem:[%s1530 + $0xb0] sm:$0xff]
    %v1554 = vld [vmem:[%s1530 + $0xb8] sm:$0xff]
    %v1555 = vld [vmem:[%s1530 + $0xc0] sm:$0xff]
    %v1556 = vld [vmem:[%s1530 + $0xc8] sm:$0xff]
    %v1557 = vld [vmem:[%s1530 + $0xd0] sm:$0xff]
    %v1558 = vld [vmem:[%s1530 + $0xd8] sm:$0xff]
    %v1559 = vld [vmem:[%s1530 + $0xe0] sm:$0xff]
    %v1560 = vld [vmem:[%s1530 + $0xe8] sm:$0xff]
    %v1561 = vld [vmem:[%s1530 + $0xf0] sm:$0xff]
    %v1562 = vld [vmem:[%s1530 + $0xf8] sm:$0xff]
    %v1563 = vrot.slane %v959, 5
    %v1564 = vrot.slane %v961, 4
    %v1565 = vsel %vm1001, %v1564, %v1563
    %v1566 = vrot.slane %v960, 5
    %v1567 = vrot.slane %v962, 4
    %v1568 = vsel %vm1001, %v1567, %v1566
    %1571 = vmatprep.subr.mxu0 0.0
    %1572 = vmatpush1.msra.mxu0 %v1531
    %1573 = vmatprep.subr.mxu0 0.0
    %1574 = vmatpush1.msra.mxu0 %v1532
    %1575 = vmatprep.subr.mxu0 0.0
    %1576 = vmatpush1.msra.mxu0 %v1533
    %1577 = vmatprep.subr.mxu0 0.0
    %1578 = vmatpush1.msra.mxu0 %v1534
    %1579 = vmatprep.subr.mxu0 0.0
    %1580 = vmatpush1.msra.mxu0 %v1535
    %1581 = vmatprep.subr.mxu0 0.0
    %1582 = vmatpush1.msra.mxu0 %v1536
    %1583 = vmatprep.subr.mxu0 0.0
    %1584 = vmatpush1.msra.mxu0 %v1537
    %1585 = vmatprep.subr.mxu0 0.0
    %1586 = vmatpush1.msra.mxu0 %v1538
    %1587 = vmatprep.subr.mxu0 0.0
    %1588 = vmatpush1.msra.mxu0 %v1539
    %1589 = vmatprep.subr.mxu0 0.0
    %1590 = vmatpush1.msra.mxu0 %v1540
    %1591 = vmatprep.subr.mxu0 0.0
    %1592 = vmatpush1.msra.mxu0 %v1541
    %1593 = vmatprep.subr.mxu0 0.0
    %1594 = vmatpush1.msra.mxu0 %v1542
    %1595 = vmatprep.subr.mxu0 0.0
    %1596 = vmatpush1.msra.mxu0 %v1543
    %1597 = vmatprep.subr.mxu0 0.0
    %1598 = vmatpush1.msra.mxu0 %v1544
    %1599 = vmatprep.subr.mxu0 0.0
    %1600 = vmatpush1.msra.mxu0 %v1545
    %1601 = vmatprep.subr.mxu0 0.0
    %1602 = vmatpush1.msra.mxu0 %v1546
    %1603 = vmatprep.subr.mxu0 0.0
    %1604 = vmatpush1.msra.mxu0 %v1547
    %1605 = vmatprep.subr.mxu0 0.0
    %1606 = vmatpush1.msra.mxu0 %v1548
    %1607 = vmatprep.subr.mxu0 0.0
    %1608 = vmatpush1.msra.mxu0 %v1549
    %1609 = vmatprep.subr.mxu0 0.0
    %1610 = vmatpush1.msra.mxu0 %v1550
    %1611 = vmatprep.subr.mxu0 0.0
    %1612 = vmatpush1.msra.mxu0 %v1551
    %1613 = vmatprep.subr.mxu0 0.0
    %1614 = vmatpush1.msra.mxu0 %v1552
    %1615 = vmatprep.subr.mxu0 0.0
    %1616 = vmatpush1.msra.mxu0 %v1553
    %1617 = vmatprep.subr.mxu0 0.0
    %1618 = vmatpush1.msra.mxu0 %v1554
    %1619 = vmatprep.subr.mxu0 0.0
    %1620 = vmatpush1.msra.mxu0 %v1555
    %1621 = vmatprep.subr.mxu0 0.0
    %1622 = vmatpush1.msra.mxu0 %v1556
    %1623 = vmatprep.subr.mxu0 0.0
    %1624 = vmatpush1.msra.mxu0 %v1557
    %1625 = vmatprep.subr.mxu0 0.0
    %1626 = vmatpush1.msra.mxu0 %v1558
    %1627 = vmatprep.subr.mxu0 0.0
    %1628 = vmatpush1.msra.mxu0 %v1559
    %1629 = vmatprep.subr.mxu0 0.0
    %1630 = vmatpush1.msra.mxu0 %v1560
    %1631 = vmatprep.subr.mxu0 0.0
    %1632 = vmatpush1.msra.mxu0 %v1561
    %1633 = vmatprep.subr.mxu0 0.0
    %1634 = vmatpush1.msra.mxu0 %v1562
    %1635 = vmatprep.mubr.f32.mxu0 %v1568
    %1636 = vmatmul.mubr.f32.gmra.mrb[0].mxu0 %v1565
    %v1637 = vpop.f32.mrb[0].mxu0
    %v1638 = vadd.f32 0.0, %v1637
    %v1639 = vpop.f32.mrb[0].mxu0
    %1640 = vdwg.mxu0
    %v1641 = vadd.f32 %v1529, %v1638
    %s1642 = scalar_lea.vmem %s10, 1536
    %v1643 = vld [vmem:[%s1642] sm:$0xff]
    %v1644 = vld [vmem:[%s1642 + $0x8] sm:$0xff]
    %v1645 = vld [vmem:[%s1642 + $0x10] sm:$0xff]
    %v1646 = vld [vmem:[%s1642 + $0x18] sm:$0xff]
    %v1647 = vld [vmem:[%s1642 + $0x20] sm:$0xff]
    %v1648 = vld [vmem:[%s1642 + $0x28] sm:$0xff]
    %v1649 = vld [vmem:[%s1642 + $0x30] sm:$0xff]
    %v1650 = vld [vmem:[%s1642 + $0x38] sm:$0xff]
    %v1651 = vld [vmem:[%s1642 + $0x40] sm:$0xff]
    %v1652 = vld [vmem:[%s1642 + $0x48] sm:$0xff]
    %v1653 = vld [vmem:[%s1642 + $0x50] sm:$0xff]
    %v1654 = vld [vmem:[%s1642 + $0x58] sm:$0xff]
    %v1655 = vld [vmem:[%s1642 + $0x60] sm:$0xff]
    %v1656 = vld [vmem:[%s1642 + $0x68] sm:$0xff]
    %v1657 = vld [vmem:[%s1642 + $0x70] sm:$0xff]
    %v1658 = vld [vmem:[%s1642 + $0x78] sm:$0xff]
    %v1659 = vld [vmem:[%s1642 + $0x80] sm:$0xff]
    %v1660 = vld [vmem:[%s1642 + $0x88] sm:$0xff]
    %v1661 = vld [vmem:[%s1642 + $0x90] sm:$0xff]
    %v1662 = vld [vmem:[%s1642 + $0x98] sm:$0xff]
    %v1663 = vld [vmem:[%s1642 + $0xa0] sm:$0xff]
    %v1664 = vld [vmem:[%s1642 + $0xa8] sm:$0xff]
    %v1665 = vld [vmem:[%s1642 + $0xb0] sm:$0xff]
    %v1666 = vld [vmem:[%s1642 + $0xb8] sm:$0xff]
    %v1667 = vld [vmem:[%s1642 + $0xc0] sm:$0xff]
    %v1668 = vld [vmem:[%s1642 + $0xc8] sm:$0xff]
    %v1669 = vld [vmem:[%s1642 + $0xd0] sm:$0xff]
    %v1670 = vld [vmem:[%s1642 + $0xd8] sm:$0xff]
    %v1671 = vld [vmem:[%s1642 + $0xe0] sm:$0xff]
    %v1672 = vld [vmem:[%s1642 + $0xe8] sm:$0xff]
    %v1673 = vld [vmem:[%s1642 + $0xf0] sm:$0xff]
    %v1674 = vld [vmem:[%s1642 + $0xf8] sm:$0xff]
    %v1675 = vrot.slane %v959, 6
    %v1676 = vrot.slane %v961, 5
    %v1677 = vsel %vm1001, %v1676, %v1675
    %v1678 = vrot.slane %v960, 6
    %v1679 = vrot.slane %v962, 5
    %v1680 = vsel %vm1001, %v1679, %v1678
    %1683 = vmatprep.subr.mxu0 0.0
    %1684 = vmatpush1.msra.mxu0 %v1643
    %1685 = vmatprep.subr.mxu0 0.0
    %1686 = vmatpush1.msra.mxu0 %v1644
    %1687 = vmatprep.subr.mxu0 0.0
    %1688 = vmatpush1.msra.mxu0 %v1645
    %1689 = vmatprep.subr.mxu0 0.0
    %1690 = vmatpush1.msra.mxu0 %v1646
    %1691 = vmatprep.subr.mxu0 0.0
    %1692 = vmatpush1.msra.mxu0 %v1647
    %1693 = vmatprep.subr.mxu0 0.0
    %1694 = vmatpush1.msra.mxu0 %v1648
    %1695 = vmatprep.subr.mxu0 0.0
    %1696 = vmatpush1.msra.mxu0 %v1649
    %1697 = vmatprep.subr.mxu0 0.0
    %1698 = vmatpush1.msra.mxu0 %v1650
    %1699 = vmatprep.subr.mxu0 0.0
    %1700 = vmatpush1.msra.mxu0 %v1651
    %1701 = vmatprep.subr.mxu0 0.0
    %1702 = vmatpush1.msra.mxu0 %v1652
    %1703 = vmatprep.subr.mxu0 0.0
    %1704 = vmatpush1.msra.mxu0 %v1653
    %1705 = vmatprep.subr.mxu0 0.0
    %1706 = vmatpush1.msra.mxu0 %v1654
    %1707 = vmatprep.subr.mxu0 0.0
    %1708 = vmatpush1.msra.mxu0 %v1655
    %1709 = vmatprep.subr.mxu0 0.0
    %1710 = vmatpush1.msra.mxu0 %v1656
    %1711 = vmatprep.subr.mxu0 0.0
    %1712 = vmatpush1.msra.mxu0 %v1657
    %1713 = vmatprep.subr.mxu0 0.0
    %1714 = vmatpush1.msra.mxu0 %v1658
    %1715 = vmatprep.subr.mxu0 0.0
    %1716 = vmatpush1.msra.mxu0 %v1659
    %1717 = vmatprep.subr.mxu0 0.0
    %1718 = vmatpush1.msra.mxu0 %v1660
    %1719 = vmatprep.subr.mxu0 0.0
    %1720 = vmatpush1.msra.mxu0 %v1661
    %1721 = vmatprep.subr.mxu0 0.0
    %1722 = vmatpush1.msra.mxu0 %v1662
    %1723 = vmatprep.subr.mxu0 0.0
    %1724 = vmatpush1.msra.mxu0 %v1663
    %1725 = vmatprep.subr.mxu0 0.0
    %1726 = vmatpush1.msra.mxu0 %v1664
    %1727 = vmatprep.subr.mxu0 0.0
    %1728 = vmatpush1.msra.mxu0 %v1665
    %1729 = vmatprep.subr.mxu0 0.0
    %1730 = vmatpush1.msra.mxu0 %v1666
    %1731 = vmatprep.subr.mxu0 0.0
    %1732 = vmatpush1.msra.mxu0 %v1667
    %1733 = vmatprep.subr.mxu0 0.0
    %1734 = vmatpush1.msra.mxu0 %v1668
    %1735 = vmatprep.subr.mxu0 0.0
    %1736 = vmatpush1.msra.mxu0 %v1669
    %1737 = vmatprep.subr.mxu0 0.0
    %1738 = vmatpush1.msra.mxu0 %v1670
    %1739 = vmatprep.subr.mxu0 0.0
    %1740 = vmatpush1.msra.mxu0 %v1671
    %1741 = vmatprep.subr.mxu0 0.0
    %1742 = vmatpush1.msra.mxu0 %v1672
    %1743 = vmatprep.subr.mxu0 0.0
    %1744 = vmatpush1.msra.mxu0 %v1673
    %1745 = vmatprep.subr.mxu0 0.0
    %1746 = vmatpush1.msra.mxu0 %v1674
    %1747 = vmatprep.mubr.f32.mxu0 %v1680
    %1748 = vmatmul.mubr.f32.gmra.mrb[0].mxu0 %v1677
    %v1749 = vpop.f32.mrb[0].mxu0
    %v1750 = vadd.f32 0.0, %v1749
    %v1751 = vpop.f32.mrb[0].mxu0
    %1752 = vdwg.mxu0
    %v1753 = vadd.f32 %v1641, %v1750
    %s1754 = scalar_lea.vmem %s10, 1792
    %v1755 = vld [vmem:[%s1754] sm:$0xff]
    %v1756 = vld [vmem:[%s1754 + $0x8] sm:$0xff]
    %v1757 = vld [vmem:[%s1754 + $0x10] sm:$0xff]
    %v1758 = vld [vmem:[%s1754 + $0x18] sm:$0xff]
    %v1759 = vld [vmem:[%s1754 + $0x20] sm:$0xff]
    %v1760 = vld [vmem:[%s1754 + $0x28] sm:$0xff]
    %v1761 = vld [vmem:[%s1754 + $0x30] sm:$0xff]
    %v1762 = vld [vmem:[%s1754 + $0x38] sm:$0xff]
    %v1763 = vld [vmem:[%s1754 + $0x40] sm:$0xff]
    %v1764 = vld [vmem:[%s1754 + $0x48] sm:$0xff]
    %v1765 = vld [vmem:[%s1754 + $0x50] sm:$0xff]
    %v1766 = vld [vmem:[%s1754 + $0x58] sm:$0xff]
    %v1767 = vld [vmem:[%s1754 + $0x60] sm:$0xff]
    %v1768 = vld [vmem:[%s1754 + $0x68] sm:$0xff]
    %v1769 = vld [vmem:[%s1754 + $0x70] sm:$0xff]
    %v1770 = vld [vmem:[%s1754 + $0x78] sm:$0xff]
    %v1771 = vld [vmem:[%s1754 + $0x80] sm:$0xff]
    %v1772 = vld [vmem:[%s1754 + $0x88] sm:$0xff]
    %v1773 = vld [vmem:[%s1754 + $0x90] sm:$0xff]
    %v1774 = vld [vmem:[%s1754 + $0x98] sm:$0xff]
    %v1775 = vld [vmem:[%s1754 + $0xa0] sm:$0xff]
    %v1776 = vld [vmem:[%s1754 + $0xa8] sm:$0xff]
    %v1777 = vld [vmem:[%s1754 + $0xb0] sm:$0xff]
    %v1778 = vld [vmem:[%s1754 + $0xb8] sm:$0xff]
    %v1779 = vld [vmem:[%s1754 + $0xc0] sm:$0xff]
    %v1780 = vld [vmem:[%s1754 + $0xc8] sm:$0xff]
    %v1781 = vld [vmem:[%s1754 + $0xd0] sm:$0xff]
    %v1782 = vld [vmem:[%s1754 + $0xd8] sm:$0xff]
    %v1783 = vld [vmem:[%s1754 + $0xe0] sm:$0xff]
    %v1784 = vld [vmem:[%s1754 + $0xe8] sm:$0xff]
    %v1785 = vld [vmem:[%s1754 + $0xf0] sm:$0xff]
    %v1786 = vld [vmem:[%s1754 + $0xf8] sm:$0xff]
    %v1787 = vrot.slane %v959, 7
    %v1788 = vrot.slane %v961, 6
    %v1789 = vsel %vm1001, %v1788, %v1787
    %v1790 = vrot.slane %v960, 7
    %v1791 = vrot.slane %v962, 6
    %v1792 = vsel %vm1001, %v1791, %v1790
    %1795 = vmatprep.subr.mxu0 0.0
    %1796 = vmatpush1.msra.mxu0 %v1755
    %1797 = vmatprep.subr.mxu0 0.0
    %1798 = vmatpush1.msra.mxu0 %v1756
    %1799 = vmatprep.subr.mxu0 0.0
    %1800 = vmatpush1.msra.mxu0 %v1757
    %1801 = vmatprep.subr.mxu0 0.0
    %1802 = vmatpush1.msra.mxu0 %v1758
    %1803 = vmatprep.subr.mxu0 0.0
    %1804 = vmatpush1.msra.mxu0 %v1759
    %1805 = vmatprep.subr.mxu0 0.0
    %1806 = vmatpush1.msra.mxu0 %v1760
    %1807 = vmatprep.subr.mxu0 0.0
    %1808 = vmatpush1.msra.mxu0 %v1761
    %1809 = vmatprep.subr.mxu0 0.0
    %1810 = vmatpush1.msra.mxu0 %v1762
    %1811 = vmatprep.subr.mxu0 0.0
    %1812 = vmatpush1.msra.mxu0 %v1763
    %1813 = vmatprep.subr.mxu0 0.0
    %1814 = vmatpush1.msra.mxu0 %v1764
    %1815 = vmatprep.subr.mxu0 0.0
    %1816 = vmatpush1.msra.mxu0 %v1765
    %1817 = vmatprep.subr.mxu0 0.0
    %1818 = vmatpush1.msra.mxu0 %v1766
    %1819 = vmatprep.subr.mxu0 0.0
    %1820 = vmatpush1.msra.mxu0 %v1767
    %1821 = vmatprep.subr.mxu0 0.0
    %1822 = vmatpush1.msra.mxu0 %v1768
    %1823 = vmatprep.subr.mxu0 0.0
    %1824 = vmatpush1.msra.mxu0 %v1769
    %1825 = vmatprep.subr.mxu0 0.0
    %1826 = vmatpush1.msra.mxu0 %v1770
    %1827 = vmatprep.subr.mxu0 0.0
    %1828 = vmatpush1.msra.mxu0 %v1771
    %1829 = vmatprep.subr.mxu0 0.0
    %1830 = vmatpush1.msra.mxu0 %v1772
    %1831 = vmatprep.subr.mxu0 0.0
    %1832 = vmatpush1.msra.mxu0 %v1773
    %1833 = vmatprep.subr.mxu0 0.0
    %1834 = vmatpush1.msra.mxu0 %v1774
    %1835 = vmatprep.subr.mxu0 0.0
    %1836 = vmatpush1.msra.mxu0 %v1775
    %1837 = vmatprep.subr.mxu0 0.0
    %1838 = vmatpush1.msra.mxu0 %v1776
    %1839 = vmatprep.subr.mxu0 0.0
    %1840 = vmatpush1.msra.mxu0 %v1777
    %1841 = vmatprep.subr.mxu0 0.0
    %1842 = vmatpush1.msra.mxu0 %v1778
    %1843 = vmatprep.subr.mxu0 0.0
    %1844 = vmatpush1.msra.mxu0 %v1779
    %1845 = vmatprep.subr.mxu0 0.0
    %1846 = vmatpush1.msra.mxu0 %v1780
    %1847 = vmatprep.subr.mxu0 0.0
    %1848 = vmatpush1.msra.mxu0 %v1781
    %1849 = vmatprep.subr.mxu0 0.0
    %1850 = vmatpush1.msra.mxu0 %v1782
    %1851 = vmatprep.subr.mxu0 0.0
    %1852 = vmatpush1.msra.mxu0 %v1783
    %1853 = vmatprep.subr.mxu0 0.0
    %1854 = vmatpush1.msra.mxu0 %v1784
    %1855 = vmatprep.subr.mxu0 0.0
    %1856 = vmatpush1.msra.mxu0 %v1785
    %1857 = vmatprep.subr.mxu0 0.0
    %1858 = vmatpush1.msra.mxu0 %v1786
    %1859 = vmatprep.mubr.f32.mxu0 %v1792
    %1860 = vmatmul.mubr.f32.gmra.mrb[0].mxu0 %v1789
    %v1861 = vpop.f32.mrb[0].mxu0
    %v1862 = vadd.f32 0.0, %v1861
    %v1863 = vpop.f32.mrb[0].mxu0
    %1864 = vdwg.mxu0
    %v1865 = vadd.f32 %v1753, %v1862
    %1866 = vst [vmem:[#allocation2] sm:$0x3] %v1865
    // Predicated region
    $region50: #{mhd_sound_encoder.1} parent=1 // pred_check
      _
    $region51: #{mhd_sound_encoder.1} parent=1 // pred_check_branch
      %1868 = sbr.rel (0) target = $region53
    $region52: #{mhd_sound_encoder.1} parent=1 // pred_region
      %s1870 = ssub.s32 32, 32
      %1871 = vsyncadd [#allocation3], %s1870
      %s1873 = sshll.u32 [#allocation2], 4
      %s1874 = int_to_ptr.vmem [resolvable:$true] %s1873
      %1876 = dma.vmem_to_hbm [thread:$0]  %s1874, 32, %s12, [#allocation3]
    $region53: #{mhd_sound_encoder.1} parent=1 // pred_fallthru
      _
    // Predicated region
    $region54: #{mhd_sound_encoder.1} parent=1 // pred_check
      _
    $region55: #{mhd_sound_encoder.1} parent=1 // pred_check_branch
      %1878 = sbr.rel (0) target = $region57
    $region56: #{mhd_sound_encoder.1} parent=1 // pred_region
      %1879 = dma.done [#allocation3], 32
    $region57: #{mhd_sound_encoder.1} parent=1 // pred_fallthru
      _
    %1880 = vsyncpa [#allocation3], 1

</llo_original>
